<compile_context>
chip_gen: v7x
topology: tpu7x:2x2x1
jax: 0.10.0
libtpu: 0.0.40
codegen_flags: <defaults>
</compile_context>

<pallas_src>
import functools
import math

import jax
import jax.numpy as jnp
import numpy as np
from jax.experimental import pallas as pl
from jax.experimental.pallas import tpu as pltpu


def _mhsa_kernel(x_ref, wqkv_ref, wo_ref, o_ref, q_sc, k_sc, v_sc, *,
                 n_heads, d_head, tq, scale, approx_recip):
    H, dh = n_heads, d_head
    D = H * dh
    qi = pl.program_id(1)

    # ---- once per batch element: fused QKV projection for the full sequence.
    @pl.when(qi == 0)
    def _():
        x = x_ref[0]                                            # (L, D)
        L = x.shape[0]
        qkv = jnp.dot(x, wqkv_ref[...],                         # (L, 3D), wide N
                      preferred_element_type=jnp.float32)
        q = qkv[:, 0 * D:1 * D] * scale                         # fold 1/sqrt(dh) once
        k = qkv[:, 1 * D:2 * D]
        v = qkv[:, 2 * D:3 * D]
        # Head-major (H, L, dh): one relayout per batch element instead of
        # per-head lane slicing inside the attention computation.
        q_sc[...] = jnp.swapaxes(q.reshape(L, H, dh), 0, 1).astype(q_sc.dtype)
        k_sc[...] = jnp.swapaxes(k.reshape(L, H, dh), 0, 1).astype(k_sc.dtype)
        v_sc[...] = jnp.swapaxes(v.reshape(L, H, dh), 0, 1).astype(v_sc.dtype)

    # ---- attention for this query tile, all heads batched on the MXU.
    start = pl.multiple_of(qi * tq, tq)
    qh = q_sc[:, pl.ds(start, tq), :]                           # (H, TQ, dh)
    k = k_sc[...]                                               # (H, L,  dh)
    v = v_sc[...]                                               # (H, L,  dh)

    s = jnp.einsum('hqd,hkd->hqk', qh, k,
                   preferred_element_type=jnp.float32)          # (H, TQ, L) f32
    # TODO(synk): optional additive mask (mask=None path only) would be added to `s`.
    m = jnp.max(s, axis=-1, keepdims=True)
    e = jnp.exp(s - m)                                          # f32 softmax math (v5e-safe)
    l = jnp.sum(e, axis=-1, keepdims=True)                      # (H, TQ, 1)

    ctx = jnp.einsum('hqk,hkd->hqd', e.astype(v.dtype), v,
                     preferred_element_type=jnp.float32)        # (H, TQ, dh)
    ctx = ctx * pl.reciprocal(l, approx=approx_recip)           # deferred normalization

    # (H, TQ, dh) -> (TQ, H*dh): matches PyTorch transpose(1,2).view(B, L, D).
    ctx = jnp.swapaxes(ctx, 0, 1).reshape(tq, D)
    out = jnp.dot(ctx.astype(wo_ref.dtype), wo_ref[...],
                  preferred_element_type=jnp.float32)           # (TQ, D)
    o_ref[0] = out.astype(o_ref.dtype)


def _pick_q_tile(L):
    if L <= 256:
        return L                 # single tile; block equals full dim
    for t in (256, 128):
        if L % t == 0:
            return t             # sublane-aligned query tile
    return L                     # fallback: no query tiling


def multi_head_self_attention(x, wq, wk, wv, wo, n_heads, *, compute_dtype=None):
    """x: (B, L, d_model).  Weights in PyTorch Linear layout (out_feat, in_feat).

    compute_dtype: MXU operand dtype (e.g. jnp.bfloat16 on v6e/v7x); accumulation
    and softmax math stay in f32.  Defaults to x.dtype.
    """
    B, L, D = x.shape
    assert D % n_heads == 0, "d_model must be divisible by n_heads"
    dh = D // n_heads
    cdt = np.dtype(x.dtype if compute_dtype is None else compute_dtype)
    out_dtype = x.dtype

    # Fuse + pre-transpose weights once outside the kernel (PyTorch Linear is
    # y = x @ W.T), so no weight transpose ever happens in-kernel.
    wqkv_t = jnp.concatenate([wq.T, wk.T, wv.T], axis=1).astype(cdt)    # (D, 3D)
    wo_t = wo.T.astype(cdt)                                             # (D, D)
    x_c = x.astype(cdt)

    tq = _pick_q_tile(L)
    nq = L // tq
    kernel = functools.partial(
        _mhsa_kernel, n_heads=n_heads, d_head=dh, tq=tq,
        scale=1.0 / math.sqrt(dh),
        approx_recip=(cdt != np.dtype(np.float32)))

    grid_spec = pltpu.PrefetchScalarGridSpec(
        num_scalar_prefetch=0,
        grid=(B, nq),
        in_specs=[
            # Full sequence per batch element; index map ignores the q-tile axis,
            # so the x block is only re-DMA'd when b changes.
            pl.BlockSpec((1, L, D), lambda b, q: (b, 0, 0)),
            # Constant-index weight blocks: fetched once for the whole grid.
            # TODO(synk): pipeline_mode=pl.Buffered(1) on these for v7x so the
            # weight buffers are not double-buffered (halves their VMEM cost).
            pl.BlockSpec((D, 3 * D), lambda b, q: (0, 0)),
            pl.BlockSpec((D, D), lambda b, q: (0, 0)),
        ],
        out_specs=pl.BlockSpec((1, tq, D), lambda b, q: (b, q, 0)),
        scratch_shapes=[
            pltpu.VMEM((n_heads, L, dh), cdt),   # scaled Q, head-major
            pltpu.VMEM((n_heads, L, dh), cdt),   # K
            pltpu.VMEM((n_heads, L, dh), cdt),   # V
        ],
    )
    return pl.pallas_call(
        kernel,
        out_shape=jax.ShapeDtypeStruct((B, L, D), out_dtype),
        grid_spec=grid_spec,
        # TODO(synk): for large L/D raise vmem_limit_bytes per generation
        # (v6e: 128 MiB physical, v7x: only 64 MiB) and tile the KV axis with
        # online softmax instead of holding full K/V per batch element.
        compiler_params=pltpu.CompilerParams(
            dimension_semantics=("parallel", "arbitrary")),
    )(x_c, wqkv_t, wo_t)


def _reference(x, wq, wk, wv, wo, n_heads):
    B, L, D = x.shape
    dh = D // n_heads
    q = (x @ wq.T).reshape(B, L, n_heads, dh).transpose(0, 2, 1, 3)
    k = (x @ wk.T).reshape(B, L, n_heads, dh).transpose(0, 2, 1, 3)
    v = (x @ wv.T).reshape(B, L, n_heads, dh).transpose(0, 2, 1, 3)
    scores = jnp.einsum("bhqd,bhkd->bhqk", q, k) / math.sqrt(dh)
    attn = jax.nn.softmax(scores, axis=-1)
    ctx = jnp.einsum("bhqk,bhkd->bhqd", attn, v)
    ctx = ctx.transpose(0, 2, 1, 3).reshape(B, L, D)
    return ctx @ wo.T


if __name__ == "__main__":
    B, L, d_model, n_heads = 2, 8, 32, 4

    key = jax.random.PRNGKey(0)
    kx, kq, kk, kv, ko = jax.random.split(key, 5)
    x = jax.random.normal(kx, (B, L, d_model), dtype=jnp.float32)
    # PyTorch Linear weight layout: (out_features, in_features).
    scale = 1.0 / math.sqrt(d_model)
    wq = jax.random.uniform(kq, (d_model, d_model), jnp.float32, -scale, scale)
    wk = jax.random.uniform(kk, (d_model, d_model), jnp.float32, -scale, scale)
    wv = jax.random.uniform(kv, (d_model, d_model), jnp.float32, -scale, scale)
    wo = jax.random.uniform(ko, (d_model, d_model), jnp.float32, -scale, scale)

    ref = _reference(x, wq, wk, wv, wo, n_heads)

    # f32 path: tight check against the reference.
    out = multi_head_self_attention(x, wq, wk, wv, wo, n_heads)
    out = jax.block_until_ready(out)
    assert out.shape == (B, L, d_model)
    assert jnp.allclose(out, ref, atol=1e-5, rtol=1e-5), "f32 mismatch vs reference"

    # bf16 MXU-operand path (v6e/v7x production config): looser tolerance.
    out_bf16 = multi_head_self_attention(x, wq, wk, wv, wo, n_heads,
                                         compute_dtype=jnp.bfloat16)
    out_bf16 = jax.block_until_ready(out_bf16)
    assert out_bf16.shape == (B, L, d_model)
    assert jnp.allclose(out_bf16, ref, atol=1e-1, rtol=1e-1), "bf16 mismatch vs reference"

    print("KERNEL_OK")
</pallas_src>

<mosaic_0001>
module attributes {stable_mosaic.version = 11 : i64} {
  func.func @_mhsa_kernel(%arg0: i32, %arg1: i32, %arg2: memref<1x8x32xf32, #tpu.memory_space<vmem>>, %arg3: memref<32x96xf32, #tpu.memory_space<vmem>>, %arg4: memref<32x32xf32, #tpu.memory_space<vmem>>, %arg5: memref<1x8x32xf32, #tpu.memory_space<vmem>>, %arg6: memref<4x8x8xf32, #tpu.memory_space<vmem>>, %arg7: memref<4x8x8xf32, #tpu.memory_space<vmem>>, %arg8: memref<4x8x8xf32, #tpu.memory_space<vmem>>) attributes {dimension_semantics = [#tpu.dimension_semantics<parallel>, #tpu.dimension_semantics<arbitrary>], iteration_bounds = array<i64: 2, 1>, scalar_prefetch = 0 : i64, scratch_operands = 3 : i64, tpu.core_type = #tpu.core_type<tc>, window_params = [{transform_indices = @transform_0, window_bounds = array<i64: 1, 8, 32>}, {pipeline_mode = #tpu.pipeline_mode<synchronous>, transform_indices = @transform_1, window_bounds = array<i64: 32, 96>}, {pipeline_mode = #tpu.pipeline_mode<synchronous>, transform_indices = @transform_2, window_bounds = array<i64: 32, 32>}, {transform_indices = @transform_3, window_bounds = array<i64: 1, 8, 32>}]} {
    %c0_i32 = arith.constant 0 : i32
    %0 = arith.cmpi eq, %arg1, %c0_i32 : i32
    %1 = arith.extui %0 : i1 to i32
    %c0_i32_0 = arith.constant 0 : i32
    %2 = arith.cmpi ne, %1, %c0_i32_0 : i32
    scf.if %2 {
      %c0_17 = arith.constant 0 : index
      %c0_18 = arith.constant 0 : index
      %c0_19 = arith.constant 0 : index
      %28 = vector.load %arg2[%c0_17, %c0_18, %c0_19] : memref<1x8x32xf32, #tpu.memory_space<vmem>>, vector<1x8x32xf32>
      %29 = vector.shape_cast %28 : vector<1x8x32xf32> to vector<8x32xf32>
      %c0_20 = arith.constant 0 : index
      %c0_21 = arith.constant 0 : index
      %30 = vector.load %arg3[%c0_20, %c0_21] : memref<32x96xf32, #tpu.memory_space<vmem>>, vector<32x96xf32>
      %cst_22 = arith.constant dense<0.000000e+00> : vector<8x96xf32>
      %31 = tpu.matmul %29, %30, %cst_22 {dimension_numbers = #tpu.dot_dimension_numbers<[1], [0], [0], [1], [0, 0, 1, 1], [], []>} : vector<8x32xf32>, vector<32x96xf32>, vector<8x96xf32> -> vector<8x96xf32>
      %32 = vector.extract_strided_slice %31 {offsets = [0, 0], sizes = [8, 32], strides = [1, 1]} : vector<8x96xf32> to vector<8x32xf32>
      %cst_23 = arith.constant 0.353553385 : f32
      %33 = vector.broadcast %cst_23 : f32 to vector<8x32xf32>
      %34 = arith.mulf %32, %33 : vector<8x32xf32>
      %35 = vector.extract_strided_slice %31 {offsets = [0, 32], sizes = [8, 32], strides = [1, 1]} : vector<8x96xf32> to vector<8x32xf32>
      %36 = vector.extract_strided_slice %31 {offsets = [0, 64], sizes = [8, 32], strides = [1, 1]} : vector<8x96xf32> to vector<8x32xf32>
      %37 = vector.shape_cast %34 : vector<8x32xf32> to vector<8x4x8xf32>
      %38 = tpu.transpose %37, [1, 0, 2] : vector<8x4x8xf32> -> vector<4x8x8xf32>
      %c0_24 = arith.constant 0 : index
      %c0_25 = arith.constant 0 : index
      %c0_26 = arith.constant 0 : index
      %39 = vector.load %arg6[%c0_24, %c0_25, %c0_26] : memref<4x8x8xf32, #tpu.memory_space<vmem>>, vector<4x8x8xf32>
      tpu.vector_store %arg6[%c0_24, %c0_25, %c0_26], %38 {strides = array<i32>} : memref<4x8x8xf32, #tpu.memory_space<vmem>>, vector<4x8x8xf32>,
      %40 = vector.shape_cast %35 : vector<8x32xf32> to vector<8x4x8xf32>
      %41 = tpu.transpose %40, [1, 0, 2] : vector<8x4x8xf32> -> vector<4x8x8xf32>
      %c0_27 = arith.constant 0 : index
      %c0_28 = arith.constant 0 : index
      %c0_29 = arith.constant 0 : index
      %42 = vector.load %arg7[%c0_27, %c0_28, %c0_29] : memref<4x8x8xf32, #tpu.memory_space<vmem>>, vector<4x8x8xf32>
      tpu.vector_store %arg7[%c0_27, %c0_28, %c0_29], %41 {strides = array<i32>} : memref<4x8x8xf32, #tpu.memory_space<vmem>>, vector<4x8x8xf32>,
      %43 = vector.shape_cast %36 : vector<8x32xf32> to vector<8x4x8xf32>
      %44 = tpu.transpose %43, [1, 0, 2] : vector<8x4x8xf32> -> vector<4x8x8xf32>
      %c0_30 = arith.constant 0 : index
      %c0_31 = arith.constant 0 : index
      %c0_32 = arith.constant 0 : index
      %45 = vector.load %arg8[%c0_30, %c0_31, %c0_32] : memref<4x8x8xf32, #tpu.memory_space<vmem>>, vector<4x8x8xf32>
      tpu.vector_store %arg8[%c0_30, %c0_31, %c0_32], %44 {strides = array<i32>} : memref<4x8x8xf32, #tpu.memory_space<vmem>>, vector<4x8x8xf32>,
    } else {
    }
    %c8_i32 = arith.constant 8 : i32
    %3 = arith.muli %arg1, %c8_i32 : i32
    %4 = tpu.assume_multiple %3, 8 : i32
    %c0 = arith.constant 0 : index
    %5 = arith.index_cast %4 : i32 to index
    %c0_1 = arith.constant 0 : index
    %6 = vector.load %arg6[%c0, %5, %c0_1] : memref<4x8x8xf32, #tpu.memory_space<vmem>>, vector<4x8x8xf32>
    %c0_2 = arith.constant 0 : index
    %c0_3 = arith.constant 0 : index
    %c0_4 = arith.constant 0 : index
    %7 = vector.load %arg7[%c0_2, %c0_3, %c0_4] : memref<4x8x8xf32, #tpu.memory_space<vmem>>, vector<4x8x8xf32>
    %c0_5 = arith.constant 0 : index
    %c0_6 = arith.constant 0 : index
    %c0_7 = arith.constant 0 : index
    %8 = vector.load %arg8[%c0_5, %c0_6, %c0_7] : memref<4x8x8xf32, #tpu.memory_space<vmem>>, vector<4x8x8xf32>
    "tpu.trace_start"() <{level = 10 : i32, message = "hqd,hkd->hqk"}> : () -> ()
    %cst = arith.constant dense<0.000000e+00> : vector<4x8x8xf32>
    %9 = tpu.matmul %6, %7, %cst {dimension_numbers = #tpu.dot_dimension_numbers<[2], [2], [1], [1], [0, 0, 0, 1, 1, 1], [0], [0]>} : vector<4x8x8xf32>, vector<4x8x8xf32>, vector<4x8x8xf32> -> vector<4x8x8xf32>
    "tpu.trace_stop"() : () -> ()
    %cst_8 = arith.constant dense<0xFF800000> : vector<4x8xf32>
    %10 = vector.multi_reduction <maximumf>, %9, %cst_8 [2] : vector<4x8x8xf32> to vector<4x8xf32>
    %11 = vector.shape_cast %10 : vector<4x8xf32> to vector<4x8x1xf32>
    %12 = vector.broadcast %11 : vector<4x8x1xf32> to vector<4x8x8xf32>
    %13 = arith.subf %9, %12 : vector<4x8x8xf32>
    %14 = math.exp %13 : vector<4x8x8xf32>
    %cst_9 = arith.constant dense<0.000000e+00> : vector<4x8xf32>
    %15 = vector.multi_reduction <add>, %14, %cst_9 [2] : vector<4x8x8xf32> to vector<4x8xf32>
    %16 = vector.shape_cast %15 : vector<4x8xf32> to vector<4x8x1xf32>
    "tpu.trace_start"() <{level = 10 : i32, message = "hqk,hkd->hqd"}> : () -> ()
    %cst_10 = arith.constant dense<0.000000e+00> : vector<4x8x8xf32>
    %17 = tpu.matmul %14, %8, %cst_10 {dimension_numbers = #tpu.dot_dimension_numbers<[2], [1], [1], [2], [0, 0, 0, 1, 1, 2], [0], [0]>} : vector<4x8x8xf32>, vector<4x8x8xf32>, vector<4x8x8xf32> -> vector<4x8x8xf32>
    "tpu.trace_stop"() : () -> ()
    %18 = tpu.reciprocal %16 : vector<4x8x1xf32> -> vector<4x8x1xf32>
    %19 = vector.broadcast %18 : vector<4x8x1xf32> to vector<4x8x8xf32>
    %20 = arith.mulf %17, %19 : vector<4x8x8xf32>
    %21 = tpu.transpose %20, [1, 0, 2] : vector<4x8x8xf32> -> vector<8x4x8xf32>
    %22 = vector.shape_cast %21 : vector<8x4x8xf32> to vector<8x32xf32>
    %c0_11 = arith.constant 0 : index
    %c0_12 = arith.constant 0 : index
    %23 = vector.load %arg4[%c0_11, %c0_12] : memref<32x32xf32, #tpu.memory_space<vmem>>, vector<32x32xf32>
    %cst_13 = arith.constant dense<0.000000e+00> : vector<8x32xf32>
    %24 = tpu.matmul %22, %23, %cst_13 {dimension_numbers = #tpu.dot_dimension_numbers<[1], [0], [0], [1], [0, 0, 1, 1], [], []>} : vector<8x32xf32>, vector<32x32xf32>, vector<8x32xf32> -> vector<8x32xf32>
    %c0_14 = arith.constant 0 : index
    %c0_15 = arith.constant 0 : index
    %c0_16 = arith.constant 0 : index
    %25 = vector.load %arg5[%c0_14, %c0_15, %c0_16] : memref<1x8x32xf32, #tpu.memory_space<vmem>>, vector<1x8x32xf32>
    %26 = vector.shape_cast %25 : vector<1x8x32xf32> to vector<8x32xf32>
    %27 = vector.shape_cast %24 : vector<8x32xf32> to vector<1x8x32xf32>
    tpu.vector_store %arg5[%c0_14, %c0_15, %c0_16], %27 {strides = array<i32>} : memref<1x8x32xf32, #tpu.memory_space<vmem>>, vector<1x8x32xf32>,
    return
  }
  func.func @transform_0(%arg0: i32, %arg1: i32) -> (i32, i32, i32) {
    %c0_i32 = arith.constant 0 : i32
    %c0_i32_0 = arith.constant 0 : i32
    %c0_i32_1 = arith.constant 0 : i32
    return %arg0, %c0_i32, %c0_i32_0 : i32, i32, i32
  }
  func.func @transform_1(%arg0: i32, %arg1: i32) -> (i32, i32) {
    %c0_i32 = arith.constant 0 : i32
    %c0_i32_0 = arith.constant 0 : i32
    %c0_i32_1 = arith.constant 0 : i32
    return %c0_i32, %c0_i32_0 : i32, i32
  }
  func.func @transform_2(%arg0: i32, %arg1: i32) -> (i32, i32) {
    %c0_i32 = arith.constant 0 : i32
    %c0_i32_0 = arith.constant 0 : i32
    %c0_i32_1 = arith.constant 0 : i32
    return %c0_i32, %c0_i32_0 : i32, i32
  }
  func.func @transform_3(%arg0: i32, %arg1: i32) -> (i32, i32, i32) {
    %c0_i32 = arith.constant 0 : i32
    %c0_i32_0 = arith.constant 0 : i32
    return %arg0, %arg1, %c0_i32 : i32, i32, i32
  }
}

</mosaic_0001>

<llo_original>
// kernel: tpu_custom_call.1
$region0: #{tpu_custom_call.1}
  #allocation0 [shape = 'u32[]', space=smem, size = 0x4, offset = 0x4, fixed_abs, tag = 'smem constant byte address 0x4 - core index']
  #allocation1 [shape = 'u32[144,128]{1,0:T(1,128)}', space=vmem, size = 0x12000, scoped, tag = 'internal scratch']
  #allocation2 [shape = 'f32[4,8,8]{2,1,0:T(8,128)}', space=vmem, size = 0x4000, scoped, tag = 'scratch operand']
  #allocation3 [shape = 'f32[4,8,8]{2,1,0:T(8,128)}', space=vmem, size = 0x4000, scoped, tag = 'scratch operand']
  #allocation4 [shape = 'f32[4,8,8]{2,1,0:T(8,128)}', space=vmem, size = 0x4000, scoped, tag = 'scratch operand']
  %s0 = inlined_call_operand.hbm [shape: f32[2,8,32], index: 0, kind: input, shape index: {}]
  %s1 = inlined_call_operand.hbm [shape: f32[32,96], index: 1, kind: input, shape index: {}]
  %s2 = inlined_call_operand.hbm [shape: f32[32,32], index: 2, kind: input, shape index: {}]
  %s3 = inlined_call_operand.hbm [shape: f32[2,8,32], index: 3, kind: output, shape index: {}]
  %s4 = sld [smem:[#allocation0]]
  $region61: #{tpu_custom_call.1} parent=0
    _
  %s6 = ssub.s32 1, %s4
  %s7 = scalar_select 0, %s6, %s4
  $region1: #{tpu_custom_call.1} parent=0
    #allocation5 [shape = 'u8[8192]{0}', space=vmem, size = 0x2000, scoped, tag = 'input window, operand 0']
    #allocation6 [shape = 's32[2]{0}', space=sflag, size = 0x8, scoped, tag = 'scoped memory for tpu_custom_call.1']
    #allocation7 [shape = 's32[2]{0}', space=sflag, size = 0x8, scoped, tag = 'scoped memory for tpu_custom_call.1']
    #allocation8 [shape = 'u8[16384]{0}', space=vmem, size = 0x4000, scoped, tag = 'input window, operand 1, single buffered']
    #allocation9 [shape = 's32[1]{0}', space=sflag, size = 0x4, scoped, tag = 'scoped memory for tpu_custom_call.1']
    #allocation10 [shape = 'u8[16384]{0}', space=vmem, size = 0x4000, scoped, tag = 'input window, operand 2, single buffered']
    #allocation11 [shape = 'u8[8192]{0}', space=vmem, size = 0x2000, scoped, tag = 'output window, operand 0']
    %8 = vsyncpa [#allocation6], 0
    %s9 = scalar_lea.sflag [#allocation6], 1
    %10 = vsyncpa %s9, 0
    %11 = vsyncpa [#allocation9], 0
    %12 = vsyncpa [#allocation7], 0
    %s13 = scalar_lea.sflag [#allocation7], 1
    %14 = vsyncpa %s13, 0
    loop: start=0, step=1, limit=4
    $region2: #{tpu_custom_call.1} parent=1 // loop_pre_header
      _
    $region3: #{tpu_custom_call.1} parent=1 // loop_header
      %s16 = sphi 0, %s20
      %p17 = scmp.ge.s32.totalorder %s16, 4
      %s23 = sphi 0, %s35
      %s24 = sphi 0, %s31
      %s25 = sphi 0, %s23
      %s26 = sphi 0, %s24
      %s27 = sphi 0, %s25
      %s28 = sphi 0, %s26
      %s38 = sphi 0, %s40
      %s41 = sphi 0, %s38
      %s42 = sphi 0, %s41
      %s58 = sphi 0, %s42
      %s62 = sphi 0, %s62
      %s64 = sphi 0, %s62
      %s65 = sphi 0, %s64
      %s79 = sphi 0, %s65
      %s83 = sphi 0, %s83
      %s85 = sphi 0, %s83
      %s86 = sphi 0, %s85
      %s100 = sphi 0, %s86
      %s108 = sphi 0, %s110
      %s111 = sphi 0, %s108
      %s112 = sphi 0, %s111
      %s128 = sphi 0, %s112
    $region4: #{tpu_custom_call.1} parent=1 // loop_header_branch
      %19 = sbr.rel (%p17) target = $region8
    $region5: #{tpu_custom_call.1} parent=1 // loop_body
      %s21 = ssub.s32 %s16, 1
      %s22 = ssub.s32 %s16, 2
      %s29 = sadd.s32 1, %s24
      %p30 = scmp.ge.s32.totalorder %s29, 1
      %s31 = scalar_select %p30, 0, %s29
      %s32 = sadd.s32 1, %s23
      %s33 = scalar_select %p30, %s32, %s23
      %p34 = scmp.ge.s32.totalorder %s33, 2
      %s35 = scalar_select %p34, 0, %s33
      %s36 = ssub.s32 %s23, %s35
      %p37 = scmp.eq.s32.totalorder %s36, 0
      %s39 = sadd.s32 %s38, 1
      %s40 = scalar_select %p37, %s38, %s39
      %p43 = pneg %p37
      %p44 = scmp.eq.s32.totalorder %s16, 1
      %p45 = por %p43, %p44
      %p46 = scmp.ne.s32.totalorder %s38, %s41
      %p47 = scmp.eq.s32.totalorder %s16, 0
      %p48 = por %p46, %p47
      %p49 = scmp.ne.s32.totalorder %s38, %s41
      %p50 = scmp.eq.s32.totalorder %s21, 1
      %p51 = por %p49, %p50
      %p52 = scmp.ne.s32.totalorder %s41, %s42
      %p53 = scmp.eq.s32.totalorder %s21, 0
      %p54 = por %p52, %p53
      %p55 = scmp.ne.s32.totalorder %s41, %s42
      %p56 = scmp.eq.s32.totalorder %s22, 1
      %p57 = por %p55, %p56
      %p59 = scmp.ne.s32.totalorder %s42, %s58
      %p60 = scmp.eq.s32.totalorder %s22, 0
      %p61 = por %p59, %p60
      %s63 = sadd.s32 %s62, 1
      %p66 = scmp.eq.s32.totalorder %s16, 1
      %p67 = scmp.ne.s32.totalorder %s62, %s64
      %p68 = scmp.eq.s32.totalorder %s16, 0
      %p69 = por %p67, %p68
      %p70 = scmp.ne.s32.totalorder %s62, %s64
      %p71 = scmp.eq.s32.totalorder %s21, 1
      %p72 = por %p70, %p71
      %p73 = scmp.ne.s32.totalorder %s64, %s65
      %p74 = scmp.eq.s32.totalorder %s21, 0
      %p75 = por %p73, %p74
      %p76 = scmp.ne.s32.totalorder %s64, %s65
      %p77 = scmp.eq.s32.totalorder %s22, 1
      %p78 = por %p76, %p77
      %p80 = scmp.ne.s32.totalorder %s65, %s79
      %p81 = scmp.eq.s32.totalorder %s22, 0
      %p82 = por %p80, %p81
      %s84 = sadd.s32 %s83, 1
      %p87 = scmp.eq.s32.totalorder %s16, 1
      %p88 = scmp.ne.s32.totalorder %s83, %s85
      %p89 = scmp.eq.s32.totalorder %s16, 0
      %p90 = por %p88, %p89
      %p91 = scmp.ne.s32.totalorder %s83, %s85
      %p92 = scmp.eq.s32.totalorder %s21, 1
      %p93 = por %p91, %p92
      %p94 = scmp.ne.s32.totalorder %s85, %s86
      %p95 = scmp.eq.s32.totalorder %s21, 0
      %p96 = por %p94, %p95
      %p97 = scmp.ne.s32.totalorder %s85, %s86
      %p98 = scmp.eq.s32.totalorder %s22, 1
      %p99 = por %p97, %p98
      %p101 = scmp.ne.s32.totalorder %s86, %s100
      %p102 = scmp.eq.s32.totalorder %s22, 0
      %p103 = por %p101, %p102
      %s104 = ssub.s32 %s23, %s35
      %s105 = ssub.s32 %s24, %s31
      %s106 = sor.u32 %s104, %s105
      %p107 = scmp.eq.s32.totalorder %s106, 0
      %s109 = sadd.s32 %s108, 1
      %s110 = scalar_select %p107, %s108, %s109
      %p113 = pneg %p107
      %p114 = scmp.eq.s32.totalorder %s16, 1
      %p115 = por %p113, %p114
      %p116 = scmp.ne.s32.totalorder %s108, %s111
      %p117 = scmp.eq.s32.totalorder %s16, 0
      %p118 = por %p116, %p117
      %p119 = scmp.ne.s32.totalorder %s108, %s111
      %p120 = scmp.eq.s32.totalorder %s21, 1
      %p121 = por %p119, %p120
      %p122 = scmp.ne.s32.totalorder %s111, %s112
      %p123 = scmp.eq.s32.totalorder %s21, 0
      %p124 = por %p122, %p123
      %p125 = scmp.ne.s32.totalorder %s111, %s112
      %p126 = scmp.eq.s32.totalorder %s22, 1
      %p127 = por %p125, %p126
      %p129 = scmp.ne.s32.totalorder %s112, %s128
      %p130 = scmp.eq.s32.totalorder %s22, 0
      %p131 = por %p129, %p130
      %p132 = scmp.le.s32.totalorder 1, %s16
      %p133 = scmp.lt.s32.totalorder %s16, 3
      %p134 = pnand %p132, %p133
      %p135 = pneg %p134
      // Predicated region
      $region9: #{tpu_custom_call.1} parent=5 // pred_check
        _
      $region10: #{tpu_custom_call.1} parent=5 // pred_check_branch
        %137 = sbr.rel (%p134) target = $region12
      $region11: #{tpu_custom_call.1} parent=5 // pred_region
        %s138 = ssub.s32 %s16, 1
        // Predicated region
        $region13: #{tpu_custom_call.1} parent=11 // pred_check
          %p139 = pneg %p75
        $region14: #{tpu_custom_call.1} parent=11 // pred_check_branch
          %141 = sbr.rel (%p139) target = $region16
        $region15: #{tpu_custom_call.1} parent=11 // pred_region
          %s143 = ssub.s32 512, 512
          %144 = vsyncadd [#allocation9], %s143
          %s145 = sshll.u32 [#allocation8], 4
          %s146 = int_to_ptr.vmem [resolvable:$true] %s145
          %151 = dma.hbm_to_vmem [thread:$0]  %s1, 512, %s146, [#allocation9], 128, 128, 8
        $region16: #{tpu_custom_call.1} parent=11 // pred_fallthru
          _
        // Predicated region
        $region17: #{tpu_custom_call.1} parent=11 // pred_check
          %p152 = pneg %p96
        $region18: #{tpu_custom_call.1} parent=11 // pred_check_branch
          %154 = sbr.rel (%p152) target = $region20
        $region19: #{tpu_custom_call.1} parent=11 // pred_region
          %s156 = ssub.s32 512, 512
          %157 = vsyncadd [#allocation9], %s156
          %s158 = sshll.u32 [#allocation10], 4
          %s159 = int_to_ptr.vmem [resolvable:$true] %s158
          %164 = dma.hbm_to_vmem [thread:$0]  %s2, 512, %s159, [#allocation9], 128, 128, 8
        $region20: #{tpu_custom_call.1} parent=11 // pred_fallthru
          _
      $region12: #{tpu_custom_call.1} parent=5 // pred_fallthru
        _
      %p165 = scmp.lt.s32.totalorder %s16, 2
      // Predicated region
      $region21: #{tpu_custom_call.1} parent=5 // pred_check
        %p166 = pneg %p165
      $region22: #{tpu_custom_call.1} parent=5 // pred_check_branch
        %168 = sbr.rel (%p166) target = $region24
      $region23: #{tpu_custom_call.1} parent=5 // pred_region
        // Predicated region
        $region25: #{tpu_custom_call.1} parent=23 // pred_check
          %p169 = pneg %p48
        $region26: #{tpu_custom_call.1} parent=23 // pred_check_branch
          %171 = sbr.rel (%p169) target = $region28
        $region27: #{tpu_custom_call.1} parent=23 // pred_region
          %s172 = sand.u32 %s38, 1
          %s173 = scalar_lea.sflag [#allocation6], %s172
          %s174 = sand.u32 %s38, 1
          %s175 = smul.addr %s174, 8
          %s176 = scalar_lea.vmem [#allocation5], %s175
          %s178 = ssub.s32 128, 128
          %179 = vsyncadd %s173, %s178
          %s180 = smul.addr %s23, 128
          %s181 = scalar_lea.hbm %s0, %s180
          %s183 = sshll.u32 %s176, 4
          %s184 = int_to_ptr.vmem [resolvable:$true] %s183
          %186 = dma.hbm_to_vmem [thread:$0]  %s181, 128, %s184, %s173
        $region28: #{tpu_custom_call.1} parent=23 // pred_fallthru
          _
      $region24: #{tpu_custom_call.1} parent=5 // pred_fallthru
        _
      %p187 = scmp.le.s32.totalorder 1, %s16
      %p188 = scmp.lt.s32.totalorder %s16, 3
      %p189 = pnand %p187, %p188
      %p190 = pneg %p189
      // Predicated region
      $region29: #{tpu_custom_call.1} parent=5 // pred_check
        _
      $region30: #{tpu_custom_call.1} parent=5 // pred_check_branch
        %192 = sbr.rel (%p189) target = $region32
      $region31: #{tpu_custom_call.1} parent=5 // pred_region
        %s193 = ssub.s32 %s16, 1
        %s194 = sand.u32 %s41, 1
        %s195 = scalar_lea.sflag [#allocation6], %s194
        %s196 = sand.u32 %s41, 1
        %s197 = smul.addr %s196, 8
        %s198 = scalar_lea.vmem [#allocation5], %s197
        // Predicated region
        $region33: #{tpu_custom_call.1} parent=31 // pred_check
          %p199 = pneg %p54
        $region34: #{tpu_custom_call.1} parent=31 // pred_check_branch
          %201 = sbr.rel (%p199) target = $region36
        $region35: #{tpu_custom_call.1} parent=31 // pred_region
          %202 = dma.done %s195, 128
        $region36: #{tpu_custom_call.1} parent=31 // pred_fallthru
          _
        // Predicated region
        $region37: #{tpu_custom_call.1} parent=31 // pred_check
          %p203 = pneg %p75
        $region38: #{tpu_custom_call.1} parent=31 // pred_check_branch
          %205 = sbr.rel (%p203) target = $region40
        $region39: #{tpu_custom_call.1} parent=31 // pred_region
          %206 = dma.done [#allocation9], 512
        $region40: #{tpu_custom_call.1} parent=31 // pred_fallthru
          _
        // Predicated region
        $region41: #{tpu_custom_call.1} parent=31 // pred_check
          %p207 = pneg %p96
        $region42: #{tpu_custom_call.1} parent=31 // pred_check_branch
          %209 = sbr.rel (%p207) target = $region44
        $region43: #{tpu_custom_call.1} parent=31 // pred_region
          %210 = dma.done [#allocation9], 512
        $region44: #{tpu_custom_call.1} parent=31 // pred_fallthru
          _
        %s211 = sand.u32 %s41, 1
        %s212 = scalar_lea.sflag [#allocation6], %s211
        %s213 = sand.u32 %s41, 1
        %s214 = smul.addr %s213, 8
        %s215 = scalar_lea.vmem [#allocation5], %s214
        %p216 = pneg %p54
        %p217 = pneg %p51
        %p218 = pneg %p75
        %p219 = pneg %p72
        %p220 = pneg %p96
        %p221 = pneg %p93
        %p222 = pneg %p124
        %p223 = pneg %p121
        %s224 = sand.u32 %s111, 1
        %s225 = scalar_lea.sflag [#allocation7], %s224
        %s226 = sand.u32 %s111, 1
        %s227 = smul.addr %s226, 8
        %s228 = scalar_lea.vmem [#allocation11], %s227
        %p229 = scmp.eq.s32.totalorder %s26, 0
        // Predicated region
        $region45: #{tpu_custom_call.1} parent=31 // pred_check
          %p230 = pneg %p229
        $region46: #{tpu_custom_call.1} parent=31 // pred_check_branch
          %232 = sbr.rel (%p230) target = $region48
        $region47: #{tpu_custom_call.1} parent=31 // pred_region
          %v233 = vld [vmem:[%s198] sm:$0xff]
          %v234 = vld [vmem:[#allocation8] sm:$0xff]
          %v235 = vld [vmem:[#allocation8 + $0x8] sm:$0xff]
          %v236 = vld [vmem:[#allocation8 + $0x10] sm:$0xff]
          %v237 = vld [vmem:[#allocation8 + $0x18] sm:$0xff]
          %vm238 = vcmask 261120
          %v240 = vsel %vm238, %v233, 0
          %242 = vmatprep.subr.mxu0 0.0
          %243 = vmatpush1.msra.mxu0 %v234
          %244 = vmatprep.subr.mxu0 0.0
          %245 = vmatpush1.msra.mxu0 %v235
          %246 = vmatprep.subr.mxu0 0.0
          %247 = vmatpush1.msra.mxu0 %v236
          %248 = vmatprep.subr.mxu0 0.0
          %249 = vmatpush1.msra.mxu0 %v237
          %250 = vmatprep.subr.mxu0 0.0
          %251 = vmatpush1.msra.mxu0 0.0
          %252 = vmatprep.subr.mxu0 0.0
          %253 = vmatpush1.msra.mxu0 0.0
          %254 = vmatprep.subr.mxu0 0.0
          %255 = vmatpush1.msra.mxu0 0.0
          %256 = vmatprep.subr.mxu0 0.0
          %257 = vmatpush1.msra.mxu0 0.0
          %258 = vmatprep.subr.mxu0 0.0
          %259 = vmatpush1.msra.mxu0 0.0
          %260 = vmatprep.subr.mxu0 0.0
          %261 = vmatpush1.msra.mxu0 0.0
          %262 = vmatprep.subr.mxu0 0.0
          %263 = vmatpush1.msra.mxu0 0.0
          %264 = vmatprep.subr.mxu0 0.0
          %265 = vmatpush1.msra.mxu0 0.0
          %266 = vmatprep.subr.mxu0 0.0
          %267 = vmatpush1.msra.mxu0 0.0
          %268 = vmatprep.subr.mxu0 0.0
          %269 = vmatpush1.msra.mxu0 0.0
          %270 = vmatprep.subr.mxu0 0.0
          %271 = vmatpush1.msra.mxu0 0.0
          %272 = vmatprep.subr.mxu0 0.0
          %273 = vmatpush1.msra.mxu0 0.0
          %274 = vmatprep.subr.mxu0 0.0
          %275 = vmatpush1.msra.mxu0 0.0
          %276 = vmatprep.subr.mxu0 0.0
          %277 = vmatpush1.msra.mxu0 0.0
          %278 = vmatprep.subr.mxu0 0.0
          %279 = vmatpush1.msra.mxu0 0.0
          %280 = vmatprep.subr.mxu0 0.0
          %281 = vmatpush1.msra.mxu0 0.0
          %282 = vmatprep.subr.mxu0 0.0
          %283 = vmatpush1.msra.mxu0 0.0
          %284 = vmatprep.subr.mxu0 0.0
          %285 = vmatpush1.msra.mxu0 0.0
          %286 = vmatprep.subr.mxu0 0.0
          %287 = vmatpush1.msra.mxu0 0.0
          %288 = vmatprep.subr.mxu0 0.0
          %289 = vmatpush1.msra.mxu0 0.0
          %290 = vmatprep.subr.mxu0 0.0
          %291 = vmatpush1.msra.mxu0 0.0
          %292 = vmatprep.subr.mxu0 0.0
          %293 = vmatpush1.msra.mxu0 0.0
          %294 = vmatprep.subr.mxu0 0.0
          %295 = vmatpush1.msra.mxu0 0.0
          %296 = vmatprep.subr.mxu0 0.0
          %297 = vmatpush1.msra.mxu0 0.0
          %298 = vmatprep.subr.mxu0 0.0
          %299 = vmatpush1.msra.mxu0 0.0
          %300 = vmatprep.subr.mxu0 0.0
          %301 = vmatpush1.msra.mxu0 0.0
          %302 = vmatprep.subr.mxu0 0.0
          %303 = vmatpush1.msra.mxu0 0.0
          %304 = vmatprep.subr.mxu0 0.0
          %305 = vmatpush1.msra.mxu0 0.0
          %306 = vmatprep.mubr.f32.mxu0 0.0
          %307 = vmatmul.mubr.f32.gmra.mrb[0].mxu0 %v240
          %v308 = vpop.f32.mrb[0].mxu0
          %v309 = vadd.f32 0.0, %v308
          %v310 = vpop.f32.mrb[0].mxu0
          %311 = vdwg.mxu0
          %v312 = vmul.f32 %v309, 0.35355338
          %314 = vrot.lane.b32.xlu0 %v312, 120
          %v315 = vpop.permute.xlu0 %314
          %317 = vrot.lane.b32.xlu0 %v312, 112
          %v318 = vpop.permute.xlu0 %317
          %320 = vrot.lane.b32.xlu0 %v312, 104
          %v321 = vpop.permute.xlu0 %320
          %v323 = vcombine.low %v312, %v318
          %v324 = vcombine.high %v312, %v318
          %v326 = vunpack.c.l.s4 1983009808
          %v327 = vunpack.c.0.s8 %v326
          %v328 = vlaneseq
          %v329 = vshrl.u32 %v328, 7
          %v330 = vsub.s32 %v327, %v329
          %v331 = vrot.slane %v323, %v330
          %v333 = vunpack.c.l.s4 1983009808
          %v334 = vunpack.c.0.s8 %v333
          %v335 = vlaneseq
          %v336 = vshrl.u32 %v335, 7
          %v337 = vsub.s32 %v334, %v336
          %v338 = vrot.slane %v324, %v337
          %v339 = vcombine.low %v315, %v321
          %v340 = vcombine.high %v315, %v321
          %v342 = vunpack.c.l.s4 1983009808
          %v343 = vunpack.c.0.s8 %v342
          %v344 = vlaneseq
          %v345 = vshrl.u32 %v344, 7
          %v346 = vsub.s32 %v343, %v345
          %v347 = vrot.slane %v339, %v346
          %v349 = vunpack.c.l.s4 1983009808
          %v350 = vunpack.c.0.s8 %v349
          %v351 = vlaneseq
          %v352 = vshrl.u32 %v351, 7
          %v353 = vsub.s32 %v350, %v352
          %v354 = vrot.slane %v340, %v353
          %v355 = vcombine.low %v331, %v347
          %v356 = vcombine.high %v331, %v347
          %v358 = vunpack.c.l.s4 1934713408
          %v359 = vunpack.c.0.s8 %v358
          %v360 = vlaneseq
          %v361 = vshrl.u32 %v360, 7
          %v362 = vsub.s32 %v359, %v361
          %v363 = vrot.slane %v355, %v362
          %v365 = vunpack.c.l.s4 1934713408
          %v366 = vunpack.c.0.s8 %v365
          %v367 = vlaneseq
          %v368 = vshrl.u32 %v367, 7
          %v369 = vsub.s32 %v366, %v368
          %v370 = vrot.slane %v356, %v369
          %v371 = vcombine.low %v338, %v354
          %v372 = vcombine.high %v338, %v354
          %v374 = vunpack.c.l.s4 1934713408
          %v375 = vunpack.c.0.s8 %v374
          %v376 = vlaneseq
          %v377 = vshrl.u32 %v376, 7
          %v378 = vsub.s32 %v375, %v377
          %v379 = vrot.slane %v371, %v378
          %v381 = vunpack.c.l.s4 1934713408
          %v382 = vunpack.c.0.s8 %v381
          %v383 = vlaneseq
          %v384 = vshrl.u32 %v383, 7
          %v385 = vsub.s32 %v382, %v384
          %v386 = vrot.slane %v372, %v385
          %v387 = vcombine.high %v363, 0.0
          %v388 = vcombine.high %v370, 0.0
          %v389 = vcombine.high %v379, 0.0
          %v390 = vcombine.high %v386, 0.0
          %v391 = vcombine.low %v363, %v370
          %v393 = vunpack.c.l.s4 1983009808
          %v394 = vunpack.c.0.s8 %v393
          %v395 = vlaneseq
          %v396 = vshrl.u32 %v395, 7
          %v397 = vsub.s32 %v394, %v396
          %v398 = vrot.slane %v391, %v397
          %v399 = vcombine.low %v387, %v388
          %v401 = vunpack.c.l.s4 1983009808
          %v402 = vunpack.c.0.s8 %v401
          %v403 = vlaneseq
          %v404 = vshrl.u32 %v403, 7
          %v405 = vsub.s32 %v402, %v404
          %v406 = vrot.slane %v399, %v405
          %v407 = vcombine.low %v379, %v386
          %v409 = vunpack.c.l.s4 1983009808
          %v410 = vunpack.c.0.s8 %v409
          %v411 = vlaneseq
          %v412 = vshrl.u32 %v411, 7
          %v413 = vsub.s32 %v410, %v412
          %v414 = vrot.slane %v407, %v413
          %v415 = vcombine.low %v389, %v390
          %v417 = vunpack.c.l.s4 1983009808
          %v418 = vunpack.c.0.s8 %v417
          %v419 = vlaneseq
          %v420 = vshrl.u32 %v419, 7
          %v421 = vsub.s32 %v418, %v420
          %v422 = vrot.slane %v415, %v421
          %v423 = vcombine.low %v398, %v406
          %v424 = vcombine.high %v398, %v406
          %v426 = vunpack.c.l.s4 1934713408
          %v427 = vunpack.c.0.s8 %v426
          %v428 = vlaneseq
          %v429 = vshrl.u32 %v428, 7
          %v430 = vsub.s32 %v427, %v429
          %v431 = vrot.slane %v423, %v430
          %v433 = vunpack.c.l.s4 1934713408
          %v434 = vunpack.c.0.s8 %v433
          %v435 = vlaneseq
          %v436 = vshrl.u32 %v435, 7
          %v437 = vsub.s32 %v434, %v436
          %v438 = vrot.slane %v424, %v437
          %v439 = vcombine.low %v414, %v422
          %v440 = vcombine.high %v414, %v422
          %v442 = vunpack.c.l.s4 1934713408
          %v443 = vunpack.c.0.s8 %v442
          %v444 = vlaneseq
          %v445 = vshrl.u32 %v444, 7
          %v446 = vsub.s32 %v443, %v445
          %v447 = vrot.slane %v439, %v446
          %v449 = vunpack.c.l.s4 1934713408
          %v450 = vunpack.c.0.s8 %v449
          %v451 = vlaneseq
          %v452 = vshrl.u32 %v451, 7
          %v453 = vsub.s32 %v450, %v452
          %v454 = vrot.slane %v440, %v453
          %v455 = vcombine.low %v431, %v447
          %v456 = vcombine.high %v431, %v447
          %v457 = vcombine.low %v438, %v454
          %v458 = vcombine.high %v438, %v454
          %vm459 = vcmask 64512
          %460 = vst.msk [vmem:[#allocation2] sm:$0xff] %vm459, %v455
          %461 = vst.msk [vmem:[#allocation2 + $0x8] sm:$0xff] %vm459, %v456
          %462 = vst.msk [vmem:[#allocation2 + $0x10] sm:$0xff] %vm459, %v457
          %463 = vst.msk [vmem:[#allocation2 + $0x18] sm:$0xff] %vm459, %v458
          %465 = vrot.lane.b32.xlu0 %v309, 120
          %v466 = vpop.permute.xlu0 %465
          %467 = vrot.lane.b32.xlu0 %v309, 112
          %v468 = vpop.permute.xlu0 %467
          %469 = vrot.lane.b32.xlu0 %v309, 104
          %v470 = vpop.permute.xlu0 %469
          %471 = vrot.lane.b32.xlu0 %v309, 96
          %v472 = vpop.permute.xlu0 %471
          %473 = vrot.lane.b32.xlu0 %v466, 96
          %v474 = vpop.permute.xlu0 %473
          %475 = vrot.lane.b32.xlu0 %v468, 96
          %v476 = vpop.permute.xlu0 %475
          %477 = vrot.lane.b32.xlu0 %v470, 96
          %v478 = vpop.permute.xlu0 %477
          %v483 = vcombine.low %v472, %v476
          %v484 = vcombine.high %v472, %v476
          %v486 = vunpack.c.l.s4 1983009808
          %v487 = vunpack.c.0.s8 %v486
          %v488 = vlaneseq
          %v489 = vshrl.u32 %v488, 7
          %v490 = vsub.s32 %v487, %v489
          %v491 = vrot.slane %v483, %v490
          %v493 = vunpack.c.l.s4 1983009808
          %v494 = vunpack.c.0.s8 %v493
          %v495 = vlaneseq
          %v496 = vshrl.u32 %v495, 7
          %v497 = vsub.s32 %v494, %v496
          %v498 = vrot.slane %v484, %v497
          %v499 = vcombine.low %v474, %v478
          %v500 = vcombine.high %v474, %v478
          %v502 = vunpack.c.l.s4 1983009808
          %v503 = vunpack.c.0.s8 %v502
          %v504 = vlaneseq
          %v505 = vshrl.u32 %v504, 7
          %v506 = vsub.s32 %v503, %v505
          %v507 = vrot.slane %v499, %v506
          %v509 = vunpack.c.l.s4 1983009808
          %v510 = vunpack.c.0.s8 %v509
          %v511 = vlaneseq
          %v512 = vshrl.u32 %v511, 7
          %v513 = vsub.s32 %v510, %v512
          %v514 = vrot.slane %v500, %v513
          %v515 = vcombine.low %v491, %v507
          %v516 = vcombine.high %v491, %v507
          %v518 = vunpack.c.l.s4 1934713408
          %v519 = vunpack.c.0.s8 %v518
          %v520 = vlaneseq
          %v521 = vshrl.u32 %v520, 7
          %v522 = vsub.s32 %v519, %v521
          %v523 = vrot.slane %v515, %v522
          %v525 = vunpack.c.l.s4 1934713408
          %v526 = vunpack.c.0.s8 %v525
          %v527 = vlaneseq
          %v528 = vshrl.u32 %v527, 7
          %v529 = vsub.s32 %v526, %v528
          %v530 = vrot.slane %v516, %v529
          %v531 = vcombine.low %v498, %v514
          %v532 = vcombine.high %v498, %v514
          %v534 = vunpack.c.l.s4 1934713408
          %v535 = vunpack.c.0.s8 %v534
          %v536 = vlaneseq
          %v537 = vshrl.u32 %v536, 7
          %v538 = vsub.s32 %v535, %v537
          %v539 = vrot.slane %v531, %v538
          %v541 = vunpack.c.l.s4 1934713408
          %v542 = vunpack.c.0.s8 %v541
          %v543 = vlaneseq
          %v544 = vshrl.u32 %v543, 7
          %v545 = vsub.s32 %v542, %v544
          %v546 = vrot.slane %v532, %v545
          %v547 = vcombine.high %v523, 0.0
          %v548 = vcombine.high %v530, 0.0
          %v549 = vcombine.high %v539, 0.0
          %v550 = vcombine.high %v546, 0.0
          %v551 = vcombine.low %v523, %v530
          %v553 = vunpack.c.l.s4 1983009808
          %v554 = vunpack.c.0.s8 %v553
          %v555 = vlaneseq
          %v556 = vshrl.u32 %v555, 7
          %v557 = vsub.s32 %v554, %v556
          %v558 = vrot.slane %v551, %v557
          %v559 = vcombine.low %v547, %v548
          %v561 = vunpack.c.l.s4 1983009808
          %v562 = vunpack.c.0.s8 %v561
          %v563 = vlaneseq
          %v564 = vshrl.u32 %v563, 7
          %v565 = vsub.s32 %v562, %v564
          %v566 = vrot.slane %v559, %v565
          %v567 = vcombine.low %v539, %v546
          %v569 = vunpack.c.l.s4 1983009808
          %v570 = vunpack.c.0.s8 %v569
          %v571 = vlaneseq
          %v572 = vshrl.u32 %v571, 7
          %v573 = vsub.s32 %v570, %v572
          %v574 = vrot.slane %v567, %v573
          %v575 = vcombine.low %v549, %v550
          %v577 = vunpack.c.l.s4 1983009808
          %v578 = vunpack.c.0.s8 %v577
          %v579 = vlaneseq
          %v580 = vshrl.u32 %v579, 7
          %v581 = vsub.s32 %v578, %v580
          %v582 = vrot.slane %v575, %v581
          %v583 = vcombine.low %v558, %v566
          %v584 = vcombine.high %v558, %v566
          %v586 = vunpack.c.l.s4 1934713408
          %v587 = vunpack.c.0.s8 %v586
          %v588 = vlaneseq
          %v589 = vshrl.u32 %v588, 7
          %v590 = vsub.s32 %v587, %v589
          %v591 = vrot.slane %v583, %v590
          %v593 = vunpack.c.l.s4 1934713408
          %v594 = vunpack.c.0.s8 %v593
          %v595 = vlaneseq
          %v596 = vshrl.u32 %v595, 7
          %v597 = vsub.s32 %v594, %v596
          %v598 = vrot.slane %v584, %v597
          %v599 = vcombine.low %v574, %v582
          %v600 = vcombine.high %v574, %v582
          %v602 = vunpack.c.l.s4 1934713408
          %v603 = vunpack.c.0.s8 %v602
          %v604 = vlaneseq
          %v605 = vshrl.u32 %v604, 7
          %v606 = vsub.s32 %v603, %v605
          %v607 = vrot.slane %v599, %v606
          %v609 = vunpack.c.l.s4 1934713408
          %v610 = vunpack.c.0.s8 %v609
          %v611 = vlaneseq
          %v612 = vshrl.u32 %v611, 7
          %v613 = vsub.s32 %v610, %v612
          %v614 = vrot.slane %v600, %v613
          %v615 = vcombine.low %v591, %v607
          %v616 = vcombine.high %v591, %v607
          %v617 = vcombine.low %v598, %v614
          %v618 = vcombine.high %v598, %v614
          %619 = vst.msk [vmem:[#allocation3] sm:$0xff] %vm459, %v615
          %620 = vst.msk [vmem:[#allocation3 + $0x8] sm:$0xff] %vm459, %v616
          %621 = vst.msk [vmem:[#allocation3 + $0x10] sm:$0xff] %vm459, %v617
          %622 = vst.msk [vmem:[#allocation3 + $0x18] sm:$0xff] %vm459, %v618
          %623 = vrot.lane.b32.xlu0 %v309, 64
          %v624 = vpop.permute.xlu0 %623
          %625 = vrot.lane.b32.xlu0 %v466, 64
          %v626 = vpop.permute.xlu0 %625
          %627 = vrot.lane.b32.xlu0 %v468, 64
          %v628 = vpop.permute.xlu0 %627
          %629 = vrot.lane.b32.xlu0 %v470, 64
          %v630 = vpop.permute.xlu0 %629
          %v635 = vcombine.low %v624, %v628
          %v636 = vcombine.high %v624, %v628
          %v638 = vunpack.c.l.s4 1983009808
          %v639 = vunpack.c.0.s8 %v638
          %v640 = vlaneseq
          %v641 = vshrl.u32 %v640, 7
          %v642 = vsub.s32 %v639, %v641
          %v643 = vrot.slane %v635, %v642
          %v645 = vunpack.c.l.s4 1983009808
          %v646 = vunpack.c.0.s8 %v645
          %v647 = vlaneseq
          %v648 = vshrl.u32 %v647, 7
          %v649 = vsub.s32 %v646, %v648
          %v650 = vrot.slane %v636, %v649
          %v651 = vcombine.low %v626, %v630
          %v652 = vcombine.high %v626, %v630
          %v654 = vunpack.c.l.s4 1983009808
          %v655 = vunpack.c.0.s8 %v654
          %v656 = vlaneseq
          %v657 = vshrl.u32 %v656, 7
          %v658 = vsub.s32 %v655, %v657
          %v659 = vrot.slane %v651, %v658
          %v661 = vunpack.c.l.s4 1983009808
          %v662 = vunpack.c.0.s8 %v661
          %v663 = vlaneseq
          %v664 = vshrl.u32 %v663, 7
          %v665 = vsub.s32 %v662, %v664
          %v666 = vrot.slane %v652, %v665
          %v667 = vcombine.low %v643, %v659
          %v668 = vcombine.high %v643, %v659
          %v670 = vunpack.c.l.s4 1934713408
          %v671 = vunpack.c.0.s8 %v670
          %v672 = vlaneseq
          %v673 = vshrl.u32 %v672, 7
          %v674 = vsub.s32 %v671, %v673
          %v675 = vrot.slane %v667, %v674
          %v677 = vunpack.c.l.s4 1934713408
          %v678 = vunpack.c.0.s8 %v677
          %v679 = vlaneseq
          %v680 = vshrl.u32 %v679, 7
          %v681 = vsub.s32 %v678, %v680
          %v682 = vrot.slane %v668, %v681
          %v683 = vcombine.low %v650, %v666
          %v684 = vcombine.high %v650, %v666
          %v686 = vunpack.c.l.s4 1934713408
          %v687 = vunpack.c.0.s8 %v686
          %v688 = vlaneseq
          %v689 = vshrl.u32 %v688, 7
          %v690 = vsub.s32 %v687, %v689
          %v691 = vrot.slane %v683, %v690
          %v693 = vunpack.c.l.s4 1934713408
          %v694 = vunpack.c.0.s8 %v693
          %v695 = vlaneseq
          %v696 = vshrl.u32 %v695, 7
          %v697 = vsub.s32 %v694, %v696
          %v698 = vrot.slane %v684, %v697
          %v699 = vcombine.high %v675, 0.0
          %v700 = vcombine.high %v682, 0.0
          %v701 = vcombine.high %v691, 0.0
          %v702 = vcombine.high %v698, 0.0
          %v703 = vcombine.low %v675, %v682
          %v705 = vunpack.c.l.s4 1983009808
          %v706 = vunpack.c.0.s8 %v705
          %v707 = vlaneseq
          %v708 = vshrl.u32 %v707, 7
          %v709 = vsub.s32 %v706, %v708
          %v710 = vrot.slane %v703, %v709
          %v711 = vcombine.low %v699, %v700
          %v713 = vunpack.c.l.s4 1983009808
          %v714 = vunpack.c.0.s8 %v713
          %v715 = vlaneseq
          %v716 = vshrl.u32 %v715, 7
          %v717 = vsub.s32 %v714, %v716
          %v718 = vrot.slane %v711, %v717
          %v719 = vcombine.low %v691, %v698
          %v721 = vunpack.c.l.s4 1983009808
          %v722 = vunpack.c.0.s8 %v721
          %v723 = vlaneseq
          %v724 = vshrl.u32 %v723, 7
          %v725 = vsub.s32 %v722, %v724
          %v726 = vrot.slane %v719, %v725
          %v727 = vcombine.low %v701, %v702
          %v729 = vunpack.c.l.s4 1983009808
          %v730 = vunpack.c.0.s8 %v729
          %v731 = vlaneseq
          %v732 = vshrl.u32 %v731, 7
          %v733 = vsub.s32 %v730, %v732
          %v734 = vrot.slane %v727, %v733
          %v735 = vcombine.low %v710, %v718
          %v736 = vcombine.high %v710, %v718
          %v738 = vunpack.c.l.s4 1934713408
          %v739 = vunpack.c.0.s8 %v738
          %v740 = vlaneseq
          %v741 = vshrl.u32 %v740, 7
          %v742 = vsub.s32 %v739, %v741
          %v743 = vrot.slane %v735, %v742
          %v745 = vunpack.c.l.s4 1934713408
          %v746 = vunpack.c.0.s8 %v745
          %v747 = vlaneseq
          %v748 = vshrl.u32 %v747, 7
          %v749 = vsub.s32 %v746, %v748
          %v750 = vrot.slane %v736, %v749
          %v751 = vcombine.low %v726, %v734
          %v752 = vcombine.high %v726, %v734
          %v754 = vunpack.c.l.s4 1934713408
          %v755 = vunpack.c.0.s8 %v754
          %v756 = vlaneseq
          %v757 = vshrl.u32 %v756, 7
          %v758 = vsub.s32 %v755, %v757
          %v759 = vrot.slane %v751, %v758
          %v761 = vunpack.c.l.s4 1934713408
          %v762 = vunpack.c.0.s8 %v761
          %v763 = vlaneseq
          %v764 = vshrl.u32 %v763, 7
          %v765 = vsub.s32 %v762, %v764
          %v766 = vrot.slane %v752, %v765
          %v767 = vcombine.low %v743, %v759
          %v768 = vcombine.high %v743, %v759
          %v769 = vcombine.low %v750, %v766
          %v770 = vcombine.high %v750, %v766
          %771 = vst.msk [vmem:[#allocation4] sm:$0xff] %vm459, %v767
          %772 = vst.msk [vmem:[#allocation4 + $0x8] sm:$0xff] %vm459, %v768
          %773 = vst.msk [vmem:[#allocation4 + $0x10] sm:$0xff] %vm459, %v769
          %774 = vst.msk [vmem:[#allocation4 + $0x18] sm:$0xff] %vm459, %v770
        $region48: #{tpu_custom_call.1} parent=31 // pred_fallthru
          _
        %s775 = smul.u32 %s26, 8
        %s776 = scalar_lea.vmem [#allocation2], %s775
        %v777 = vld [vmem:[%s776] sm:$0xff]
        %v778 = vld [vmem:[%s776 + $0x8] sm:$0xff]
        %v779 = vld [vmem:[%s776 + $0x10] sm:$0xff]
        %v780 = vld [vmem:[%s776 + $0x18] sm:$0xff]
        %v781 = vld [vmem:[#allocation3] sm:$0xff]
        %v782 = vld [vmem:[#allocation3 + $0x8] sm:$0xff]
        %v783 = vld [vmem:[#allocation3 + $0x10] sm:$0xff]
        %v784 = vld [vmem:[#allocation3 + $0x18] sm:$0xff]
        %v785 = vld [vmem:[#allocation4] sm:$0xff]
        %v786 = vld [vmem:[#allocation4 + $0x8] sm:$0xff]
        %v787 = vld [vmem:[#allocation4 + $0x10] sm:$0xff]
        %v788 = vld [vmem:[#allocation4 + $0x18] sm:$0xff]
        %vm789 = vcmask 64512
        %v791 = vsel %vm789, %v777, 0
        %v794 = vsel %vm789, %v781, 0
        %796 = vmatprep.subr.mxu0 0.0
        %797 = vmatpush1.xpose.msra.mxu0 %v794
        %798 = vmatprep.subr.mxu0 0.0
        %799 = vmatpush1.xpose.msra.mxu0 0.0
        %800 = vmatprep.subr.mxu0 0.0
        %801 = vmatpush1.xpose.msra.mxu0 0.0
        %802 = vmatprep.subr.mxu0 0.0
        %803 = vmatpush1.xpose.msra.mxu0 0.0
        %804 = vmatprep.subr.mxu0 0.0
        %805 = vmatpush1.xpose.msra.mxu0 0.0
        %806 = vmatprep.subr.mxu0 0.0
        %807 = vmatpush1.xpose.msra.mxu0 0.0
        %808 = vmatprep.subr.mxu0 0.0
        %809 = vmatpush1.xpose.msra.mxu0 0.0
        %810 = vmatprep.subr.mxu0 0.0
        %811 = vmatpush1.xpose.msra.mxu0 0.0
        %812 = vmatprep.subr.mxu0 0.0
        %813 = vmatpush1.xpose.msra.mxu0 0.0
        %814 = vmatprep.subr.mxu0 0.0
        %815 = vmatpush1.xpose.msra.mxu0 0.0
        %816 = vmatprep.subr.mxu0 0.0
        %817 = vmatpush1.xpose.msra.mxu0 0.0
        %818 = vmatprep.subr.mxu0 0.0
        %819 = vmatpush1.xpose.msra.mxu0 0.0
        %820 = vmatprep.subr.mxu0 0.0
        %821 = vmatpush1.xpose.msra.mxu0 0.0
        %822 = vmatprep.subr.mxu0 0.0
        %823 = vmatpush1.xpose.msra.mxu0 0.0
        %824 = vmatprep.subr.mxu0 0.0
        %825 = vmatpush1.xpose.msra.mxu0 0.0
        %826 = vmatprep.subr.mxu0 0.0
        %827 = vmatpush1.xpose.msra.mxu0 0.0
        %828 = vmatprep.subr.mxu0 0.0
        %829 = vmatpush1.xpose.msra.mxu0 0.0
        %830 = vmatprep.subr.mxu0 0.0
        %831 = vmatpush1.xpose.msra.mxu0 0.0
        %832 = vmatprep.subr.mxu0 0.0
        %833 = vmatpush1.xpose.msra.mxu0 0.0
        %834 = vmatprep.subr.mxu0 0.0
        %835 = vmatpush1.xpose.msra.mxu0 0.0
        %836 = vmatprep.subr.mxu0 0.0
        %837 = vmatpush1.xpose.msra.mxu0 0.0
        %838 = vmatprep.subr.mxu0 0.0
        %839 = vmatpush1.xpose.msra.mxu0 0.0
        %840 = vmatprep.subr.mxu0 0.0
        %841 = vmatpush1.xpose.msra.mxu0 0.0
        %842 = vmatprep.subr.mxu0 0.0
        %843 = vmatpush1.xpose.msra.mxu0 0.0
        %844 = vmatprep.subr.mxu0 0.0
        %845 = vmatpush1.xpose.msra.mxu0 0.0
        %846 = vmatprep.subr.mxu0 0.0
        %847 = vmatpush1.xpose.msra.mxu0 0.0
        %848 = vmatprep.subr.mxu0 0.0
        %849 = vmatpush1.xpose.msra.mxu0 0.0
        %850 = vmatprep.subr.mxu0 0.0
        %851 = vmatpush1.xpose.msra.mxu0 0.0
        %852 = vmatprep.subr.mxu0 0.0
        %853 = vmatpush1.xpose.msra.mxu0 0.0
        %854 = vmatprep.subr.mxu0 0.0
        %855 = vmatpush1.xpose.msra.mxu0 0.0
        %856 = vmatprep.subr.mxu0 0.0
        %857 = vmatpush1.xpose.msra.mxu0 0.0
        %858 = vmatprep.subr.mxu0 0.0
        %859 = vmatpush1.xpose.msra.mxu0 0.0
        %860 = vmatprep.mubr.f32.mxu0 0.0
        %861 = vmatmul.mubr.f32.gmra.mrb[0].mxu0 %v791
        %v862 = vpop.f32.mrb[0].mxu0
        %v863 = vadd.f32 0.0, %v862
        %v864 = vpop.f32.mrb[0].mxu0
        %865 = vdwg.mxu0
        %v867 = vsel %vm789, %v778, 0
        %v870 = vsel %vm789, %v782, 0
        %872 = vmatprep.subr.mxu0 0.0
        %873 = vmatpush1.xpose.msra.mxu0 %v870
        %874 = vmatprep.subr.mxu0 0.0
        %875 = vmatpush1.xpose.msra.mxu0 0.0
        %876 = vmatprep.subr.mxu0 0.0
        %877 = vmatpush1.xpose.msra.mxu0 0.0
        %878 = vmatprep.subr.mxu0 0.0
        %879 = vmatpush1.xpose.msra.mxu0 0.0
        %880 = vmatprep.subr.mxu0 0.0
        %881 = vmatpush1.xpose.msra.mxu0 0.0
        %882 = vmatprep.subr.mxu0 0.0
        %883 = vmatpush1.xpose.msra.mxu0 0.0
        %884 = vmatprep.subr.mxu0 0.0
        %885 = vmatpush1.xpose.msra.mxu0 0.0
        %886 = vmatprep.subr.mxu0 0.0
        %887 = vmatpush1.xpose.msra.mxu0 0.0
        %888 = vmatprep.subr.mxu0 0.0
        %889 = vmatpush1.xpose.msra.mxu0 0.0
        %890 = vmatprep.subr.mxu0 0.0
        %891 = vmatpush1.xpose.msra.mxu0 0.0
        %892 = vmatprep.subr.mxu0 0.0
        %893 = vmatpush1.xpose.msra.mxu0 0.0
        %894 = vmatprep.subr.mxu0 0.0
        %895 = vmatpush1.xpose.msra.mxu0 0.0
        %896 = vmatprep.subr.mxu0 0.0
        %897 = vmatpush1.xpose.msra.mxu0 0.0
        %898 = vmatprep.subr.mxu0 0.0
        %899 = vmatpush1.xpose.msra.mxu0 0.0
        %900 = vmatprep.subr.mxu0 0.0
        %901 = vmatpush1.xpose.msra.mxu0 0.0
        %902 = vmatprep.subr.mxu0 0.0
        %903 = vmatpush1.xpose.msra.mxu0 0.0
        %904 = vmatprep.subr.mxu0 0.0
        %905 = vmatpush1.xpose.msra.mxu0 0.0
        %906 = vmatprep.subr.mxu0 0.0
        %907 = vmatpush1.xpose.msra.mxu0 0.0
        %908 = vmatprep.subr.mxu0 0.0
        %909 = vmatpush1.xpose.msra.mxu0 0.0
        %910 = vmatprep.subr.mxu0 0.0
        %911 = vmatpush1.xpose.msra.mxu0 0.0
        %912 = vmatprep.subr.mxu0 0.0
        %913 = vmatpush1.xpose.msra.mxu0 0.0
        %914 = vmatprep.subr.mxu0 0.0
        %915 = vmatpush1.xpose.msra.mxu0 0.0
        %916 = vmatprep.subr.mxu0 0.0
        %917 = vmatpush1.xpose.msra.mxu0 0.0
        %918 = vmatprep.subr.mxu0 0.0
        %919 = vmatpush1.xpose.msra.mxu0 0.0
        %920 = vmatprep.subr.mxu0 0.0
        %921 = vmatpush1.xpose.msra.mxu0 0.0
        %922 = vmatprep.subr.mxu0 0.0
        %923 = vmatpush1.xpose.msra.mxu0 0.0
        %924 = vmatprep.subr.mxu0 0.0
        %925 = vmatpush1.xpose.msra.mxu0 0.0
        %926 = vmatprep.subr.mxu0 0.0
        %927 = vmatpush1.xpose.msra.mxu0 0.0
        %928 = vmatprep.subr.mxu0 0.0
        %929 = vmatpush1.xpose.msra.mxu0 0.0
        %930 = vmatprep.subr.mxu0 0.0
        %931 = vmatpush1.xpose.msra.mxu0 0.0
        %932 = vmatprep.subr.mxu0 0.0
        %933 = vmatpush1.xpose.msra.mxu0 0.0
        %934 = vmatprep.subr.mxu0 0.0
        %935 = vmatpush1.xpose.msra.mxu0 0.0
        %936 = vmatprep.mubr.f32.mxu0 0.0
        %937 = vmatmul.mubr.f32.gmra.mrb[0].mxu0 %v867
        %v938 = vpop.f32.mrb[0].mxu0
        %v939 = vadd.f32 0.0, %v938
        %v940 = vpop.f32.mrb[0].mxu0
        %941 = vdwg.mxu0
        %v943 = vsel %vm789, %v779, 0
        %v946 = vsel %vm789, %v783, 0
        %948 = vmatprep.subr.mxu0 0.0
        %949 = vmatpush1.xpose.msra.mxu0 %v946
        %950 = vmatprep.subr.mxu0 0.0
        %951 = vmatpush1.xpose.msra.mxu0 0.0
        %952 = vmatprep.subr.mxu0 0.0
        %953 = vmatpush1.xpose.msra.mxu0 0.0
        %954 = vmatprep.subr.mxu0 0.0
        %955 = vmatpush1.xpose.msra.mxu0 0.0
        %956 = vmatprep.subr.mxu0 0.0
        %957 = vmatpush1.xpose.msra.mxu0 0.0
        %958 = vmatprep.subr.mxu0 0.0
        %959 = vmatpush1.xpose.msra.mxu0 0.0
        %960 = vmatprep.subr.mxu0 0.0
        %961 = vmatpush1.xpose.msra.mxu0 0.0
        %962 = vmatprep.subr.mxu0 0.0
        %963 = vmatpush1.xpose.msra.mxu0 0.0
        %964 = vmatprep.subr.mxu0 0.0
        %965 = vmatpush1.xpose.msra.mxu0 0.0
        %966 = vmatprep.subr.mxu0 0.0
        %967 = vmatpush1.xpose.msra.mxu0 0.0
        %968 = vmatprep.subr.mxu0 0.0
        %969 = vmatpush1.xpose.msra.mxu0 0.0
        %970 = vmatprep.subr.mxu0 0.0
        %971 = vmatpush1.xpose.msra.mxu0 0.0
        %972 = vmatprep.subr.mxu0 0.0
        %973 = vmatpush1.xpose.msra.mxu0 0.0
        %974 = vmatprep.subr.mxu0 0.0
        %975 = vmatpush1.xpose.msra.mxu0 0.0
        %976 = vmatprep.subr.mxu0 0.0
        %977 = vmatpush1.xpose.msra.mxu0 0.0
        %978 = vmatprep.subr.mxu0 0.0
        %979 = vmatpush1.xpose.msra.mxu0 0.0
        %980 = vmatprep.subr.mxu0 0.0
        %981 = vmatpush1.xpose.msra.mxu0 0.0
        %982 = vmatprep.subr.mxu0 0.0
        %983 = vmatpush1.xpose.msra.mxu0 0.0
        %984 = vmatprep.subr.mxu0 0.0
        %985 = vmatpush1.xpose.msra.mxu0 0.0
        %986 = vmatprep.subr.mxu0 0.0
        %987 = vmatpush1.xpose.msra.mxu0 0.0
        %988 = vmatprep.subr.mxu0 0.0
        %989 = vmatpush1.xpose.msra.mxu0 0.0
        %990 = vmatprep.subr.mxu0 0.0
        %991 = vmatpush1.xpose.msra.mxu0 0.0
        %992 = vmatprep.subr.mxu0 0.0
        %993 = vmatpush1.xpose.msra.mxu0 0.0
        %994 = vmatprep.subr.mxu0 0.0
        %995 = vmatpush1.xpose.msra.mxu0 0.0
        %996 = vmatprep.subr.mxu0 0.0
        %997 = vmatpush1.xpose.msra.mxu0 0.0
        %998 = vmatprep.subr.mxu0 0.0
        %999 = vmatpush1.xpose.msra.mxu0 0.0
        %1000 = vmatprep.subr.mxu0 0.0
        %1001 = vmatpush1.xpose.msra.mxu0 0.0
        %1002 = vmatprep.subr.mxu0 0.0
        %1003 = vmatpush1.xpose.msra.mxu0 0.0
        %1004 = vmatprep.subr.mxu0 0.0
        %1005 = vmatpush1.xpose.msra.mxu0 0.0
        %1006 = vmatprep.subr.mxu0 0.0
        %1007 = vmatpush1.xpose.msra.mxu0 0.0
        %1008 = vmatprep.subr.mxu0 0.0
        %1009 = vmatpush1.xpose.msra.mxu0 0.0
        %1010 = vmatprep.subr.mxu0 0.0
        %1011 = vmatpush1.xpose.msra.mxu0 0.0
        %1012 = vmatprep.mubr.f32.mxu0 0.0
        %1013 = vmatmul.mubr.f32.gmra.mrb[0].mxu0 %v943
        %v1014 = vpop.f32.mrb[0].mxu0
        %v1015 = vadd.f32 0.0, %v1014
        %v1016 = vpop.f32.mrb[0].mxu0
        %1017 = vdwg.mxu0
        %v1019 = vsel %vm789, %v780, 0
        %v1022 = vsel %vm789, %v784, 0
        %1024 = vmatprep.subr.mxu0 0.0
        %1025 = vmatpush1.xpose.msra.mxu0 %v1022
        %1026 = vmatprep.subr.mxu0 0.0
        %1027 = vmatpush1.xpose.msra.mxu0 0.0
        %1028 = vmatprep.subr.mxu0 0.0
        %1029 = vmatpush1.xpose.msra.mxu0 0.0
        %1030 = vmatprep.subr.mxu0 0.0
        %1031 = vmatpush1.xpose.msra.mxu0 0.0
        %1032 = vmatprep.subr.mxu0 0.0
        %1033 = vmatpush1.xpose.msra.mxu0 0.0
        %1034 = vmatprep.subr.mxu0 0.0
        %1035 = vmatpush1.xpose.msra.mxu0 0.0
        %1036 = vmatprep.subr.mxu0 0.0
        %1037 = vmatpush1.xpose.msra.mxu0 0.0
        %1038 = vmatprep.subr.mxu0 0.0
        %1039 = vmatpush1.xpose.msra.mxu0 0.0
        %1040 = vmatprep.subr.mxu0 0.0
        %1041 = vmatpush1.xpose.msra.mxu0 0.0
        %1042 = vmatprep.subr.mxu0 0.0
        %1043 = vmatpush1.xpose.msra.mxu0 0.0
        %1044 = vmatprep.subr.mxu0 0.0
        %1045 = vmatpush1.xpose.msra.mxu0 0.0
        %1046 = vmatprep.subr.mxu0 0.0
        %1047 = vmatpush1.xpose.msra.mxu0 0.0
        %1048 = vmatprep.subr.mxu0 0.0
        %1049 = vmatpush1.xpose.msra.mxu0 0.0
        %1050 = vmatprep.subr.mxu0 0.0
        %1051 = vmatpush1.xpose.msra.mxu0 0.0
        %1052 = vmatprep.subr.mxu0 0.0
        %1053 = vmatpush1.xpose.msra.mxu0 0.0
        %1054 = vmatprep.subr.mxu0 0.0
        %1055 = vmatpush1.xpose.msra.mxu0 0.0
        %1056 = vmatprep.subr.mxu0 0.0
        %1057 = vmatpush1.xpose.msra.mxu0 0.0
        %1058 = vmatprep.subr.mxu0 0.0
        %1059 = vmatpush1.xpose.msra.mxu0 0.0
        %1060 = vmatprep.subr.mxu0 0.0
        %1061 = vmatpush1.xpose.msra.mxu0 0.0
        %1062 = vmatprep.subr.mxu0 0.0
        %1063 = vmatpush1.xpose.msra.mxu0 0.0
        %1064 = vmatprep.subr.mxu0 0.0
        %1065 = vmatpush1.xpose.msra.mxu0 0.0
        %1066 = vmatprep.subr.mxu0 0.0
        %1067 = vmatpush1.xpose.msra.mxu0 0.0
        %1068 = vmatprep.subr.mxu0 0.0
        %1069 = vmatpush1.xpose.msra.mxu0 0.0
        %1070 = vmatprep.subr.mxu0 0.0
        %1071 = vmatpush1.xpose.msra.mxu0 0.0
        %1072 = vmatprep.subr.mxu0 0.0
        %1073 = vmatpush1.xpose.msra.mxu0 0.0
        %1074 = vmatprep.subr.mxu0 0.0
        %1075 = vmatpush1.xpose.msra.mxu0 0.0
        %1076 = vmatprep.subr.mxu0 0.0
        %1077 = vmatpush1.xpose.msra.mxu0 0.0
        %1078 = vmatprep.subr.mxu0 0.0
        %1079 = vmatpush1.xpose.msra.mxu0 0.0
        %1080 = vmatprep.subr.mxu0 0.0
        %1081 = vmatpush1.xpose.msra.mxu0 0.0
        %1082 = vmatprep.subr.mxu0 0.0
        %1083 = vmatpush1.xpose.msra.mxu0 0.0
        %1084 = vmatprep.subr.mxu0 0.0
        %1085 = vmatpush1.xpose.msra.mxu0 0.0
        %1086 = vmatprep.subr.mxu0 0.0
        %1087 = vmatpush1.xpose.msra.mxu0 0.0
        %1088 = vmatprep.mubr.f32.mxu0 0.0
        %1089 = vmatmul.mubr.f32.gmra.mrb[0].mxu0 %v1019
        %v1090 = vpop.f32.mrb[0].mxu0
        %v1091 = vadd.f32 0.0, %v1090
        %v1092 = vpop.f32.mrb[0].mxu0
        %1093 = vdwg.mxu0
        %v1094 = vsel %vm789, %v863, -inf
        %1095 = vmax.xlane.f32.xlu0 %v1094
        %v1096 = vpop.xlane.xlu0 %1095
        %v1097 = vsel %vm789, %v939, -inf
        %1098 = vmax.xlane.f32.xlu0 %v1097
        %v1099 = vpop.xlane.xlu0 %1098
        %v1100 = vsel %vm789, %v1015, -inf
        %1101 = vmax.xlane.f32.xlu0 %v1100
        %v1102 = vpop.xlane.xlu0 %1101
        %v1103 = vsel %vm789, %v1091, -inf
        %1104 = vmax.xlane.f32.xlu0 %v1103
        %v1105 = vpop.xlane.xlu0 %1104
        %v1106 = vsub.f32 %v863, %v1096
        %v1107 = vsub.f32 %v939, %v1099
        %v1108 = vsub.f32 %v1015, %v1102
        %v1109 = vsub.f32 %v1091, %v1105
        %v1110 = vmul.f32 %v1106, 1.442695
        %v1111 = vpow.pop %v1110
        %v1112 = vmul.f32 %v1107, 1.442695
        %v1113 = vpow.pop %v1112
        %v1114 = vmul.f32 %v1108, 1.442695
        %v1115 = vpow.pop %v1114
        %v1116 = vmul.f32 %v1109, 1.442695
        %v1117 = vpow.pop %v1116
        %v1118 = vsel %vm789, %v1111, 0.0
        %1119 = vadd.xlane.f32.xlu0 %v1118
        %v1120 = vpop.xlane.xlu0 %1119
        %v1121 = vsel %vm789, %v1113, 0.0
        %1122 = vadd.xlane.f32.xlu0 %v1121
        %v1123 = vpop.xlane.xlu0 %1122
        %v1124 = vsel %vm789, %v1115, 0.0
        %1125 = vadd.xlane.f32.xlu0 %v1124
        %v1126 = vpop.xlane.xlu0 %1125
        %v1127 = vsel %vm789, %v1117, 0.0
        %1128 = vadd.xlane.f32.xlu0 %v1127
        %v1129 = vpop.xlane.xlu0 %1128
        %v1131 = vsel %vm789, %v1111, 0
        %1133 = vmatprep.subr.mxu0 0.0
        %1134 = vmatpush1.msra.mxu0 %v785
        %1135 = vmatprep.subr.mxu0 0.0
        %1136 = vmatpush1.msra.mxu0 0.0
        %1137 = vmatprep.subr.mxu0 0.0
        %1138 = vmatpush1.msra.mxu0 0.0
        %1139 = vmatprep.subr.mxu0 0.0
        %1140 = vmatpush1.msra.mxu0 0.0
        %1141 = vmatprep.subr.mxu0 0.0
        %1142 = vmatpush1.msra.mxu0 0.0
        %1143 = vmatprep.subr.mxu0 0.0
        %1144 = vmatpush1.msra.mxu0 0.0
        %1145 = vmatprep.subr.mxu0 0.0
        %1146 = vmatpush1.msra.mxu0 0.0
        %1147 = vmatprep.subr.mxu0 0.0
        %1148 = vmatpush1.msra.mxu0 0.0
        %1149 = vmatprep.subr.mxu0 0.0
        %1150 = vmatpush1.msra.mxu0 0.0
        %1151 = vmatprep.subr.mxu0 0.0
        %1152 = vmatpush1.msra.mxu0 0.0
        %1153 = vmatprep.subr.mxu0 0.0
        %1154 = vmatpush1.msra.mxu0 0.0
        %1155 = vmatprep.subr.mxu0 0.0
        %1156 = vmatpush1.msra.mxu0 0.0
        %1157 = vmatprep.subr.mxu0 0.0
        %1158 = vmatpush1.msra.mxu0 0.0
        %1159 = vmatprep.subr.mxu0 0.0
        %1160 = vmatpush1.msra.mxu0 0.0
        %1161 = vmatprep.subr.mxu0 0.0
        %1162 = vmatpush1.msra.mxu0 0.0
        %1163 = vmatprep.subr.mxu0 0.0
        %1164 = vmatpush1.msra.mxu0 0.0
        %1165 = vmatprep.subr.mxu0 0.0
        %1166 = vmatpush1.msra.mxu0 0.0
        %1167 = vmatprep.subr.mxu0 0.0
        %1168 = vmatpush1.msra.mxu0 0.0
        %1169 = vmatprep.subr.mxu0 0.0
        %1170 = vmatpush1.msra.mxu0 0.0
        %1171 = vmatprep.subr.mxu0 0.0
        %1172 = vmatpush1.msra.mxu0 0.0
        %1173 = vmatprep.subr.mxu0 0.0
        %1174 = vmatpush1.msra.mxu0 0.0
        %1175 = vmatprep.subr.mxu0 0.0
        %1176 = vmatpush1.msra.mxu0 0.0
        %1177 = vmatprep.subr.mxu0 0.0
        %1178 = vmatpush1.msra.mxu0 0.0
        %1179 = vmatprep.subr.mxu0 0.0
        %1180 = vmatpush1.msra.mxu0 0.0
        %1181 = vmatprep.subr.mxu0 0.0
        %1182 = vmatpush1.msra.mxu0 0.0
        %1183 = vmatprep.subr.mxu0 0.0
        %1184 = vmatpush1.msra.mxu0 0.0
        %1185 = vmatprep.subr.mxu0 0.0
        %1186 = vmatpush1.msra.mxu0 0.0
        %1187 = vmatprep.subr.mxu0 0.0
        %1188 = vmatpush1.msra.mxu0 0.0
        %1189 = vmatprep.subr.mxu0 0.0
        %1190 = vmatpush1.msra.mxu0 0.0
        %1191 = vmatprep.subr.mxu0 0.0
        %1192 = vmatpush1.msra.mxu0 0.0
        %1193 = vmatprep.subr.mxu0 0.0
        %1194 = vmatpush1.msra.mxu0 0.0
        %1195 = vmatprep.subr.mxu0 0.0
        %1196 = vmatpush1.msra.mxu0 0.0
        %1197 = vmatprep.mubr.f32.mxu0 0.0
        %1198 = vmatmul.mubr.f32.gmra.mrb[0].mxu0 %v1131
        %v1199 = vpop.f32.mrb[0].mxu0
        %v1200 = vadd.f32 0.0, %v1199
        %v1201 = vpop.f32.mrb[0].mxu0
        %1202 = vdwg.mxu0
        %v1204 = vsel %vm789, %v1113, 0
        %1206 = vmatprep.subr.mxu0 0.0
        %1207 = vmatpush1.msra.mxu0 %v786
        %1208 = vmatprep.subr.mxu0 0.0
        %1209 = vmatpush1.msra.mxu0 0.0
        %1210 = vmatprep.subr.mxu0 0.0
        %1211 = vmatpush1.msra.mxu0 0.0
        %1212 = vmatprep.subr.mxu0 0.0
        %1213 = vmatpush1.msra.mxu0 0.0
        %1214 = vmatprep.subr.mxu0 0.0
        %1215 = vmatpush1.msra.mxu0 0.0
        %1216 = vmatprep.subr.mxu0 0.0
        %1217 = vmatpush1.msra.mxu0 0.0
        %1218 = vmatprep.subr.mxu0 0.0
        %1219 = vmatpush1.msra.mxu0 0.0
        %1220 = vmatprep.subr.mxu0 0.0
        %1221 = vmatpush1.msra.mxu0 0.0
        %1222 = vmatprep.subr.mxu0 0.0
        %1223 = vmatpush1.msra.mxu0 0.0
        %1224 = vmatprep.subr.mxu0 0.0
        %1225 = vmatpush1.msra.mxu0 0.0
        %1226 = vmatprep.subr.mxu0 0.0
        %1227 = vmatpush1.msra.mxu0 0.0
        %1228 = vmatprep.subr.mxu0 0.0
        %1229 = vmatpush1.msra.mxu0 0.0
        %1230 = vmatprep.subr.mxu0 0.0
        %1231 = vmatpush1.msra.mxu0 0.0
        %1232 = vmatprep.subr.mxu0 0.0
        %1233 = vmatpush1.msra.mxu0 0.0
        %1234 = vmatprep.subr.mxu0 0.0
        %1235 = vmatpush1.msra.mxu0 0.0
        %1236 = vmatprep.subr.mxu0 0.0
        %1237 = vmatpush1.msra.mxu0 0.0
        %1238 = vmatprep.subr.mxu0 0.0
        %1239 = vmatpush1.msra.mxu0 0.0
        %1240 = vmatprep.subr.mxu0 0.0
        %1241 = vmatpush1.msra.mxu0 0.0
        %1242 = vmatprep.subr.mxu0 0.0
        %1243 = vmatpush1.msra.mxu0 0.0
        %1244 = vmatprep.subr.mxu0 0.0
        %1245 = vmatpush1.msra.mxu0 0.0
        %1246 = vmatprep.subr.mxu0 0.0
        %1247 = vmatpush1.msra.mxu0 0.0
        %1248 = vmatprep.subr.mxu0 0.0
        %1249 = vmatpush1.msra.mxu0 0.0
        %1250 = vmatprep.subr.mxu0 0.0
        %1251 = vmatpush1.msra.mxu0 0.0
        %1252 = vmatprep.subr.mxu0 0.0
        %1253 = vmatpush1.msra.mxu0 0.0
        %1254 = vmatprep.subr.mxu0 0.0
        %1255 = vmatpush1.msra.mxu0 0.0
        %1256 = vmatprep.subr.mxu0 0.0
        %1257 = vmatpush1.msra.mxu0 0.0
        %1258 = vmatprep.subr.mxu0 0.0
        %1259 = vmatpush1.msra.mxu0 0.0
        %1260 = vmatprep.subr.mxu0 0.0
        %1261 = vmatpush1.msra.mxu0 0.0
        %1262 = vmatprep.subr.mxu0 0.0
        %1263 = vmatpush1.msra.mxu0 0.0
        %1264 = vmatprep.subr.mxu0 0.0
        %1265 = vmatpush1.msra.mxu0 0.0
        %1266 = vmatprep.subr.mxu0 0.0
        %1267 = vmatpush1.msra.mxu0 0.0
        %1268 = vmatprep.subr.mxu0 0.0
        %1269 = vmatpush1.msra.mxu0 0.0
        %1270 = vmatprep.mubr.f32.mxu0 0.0
        %1271 = vmatmul.mubr.f32.gmra.mrb[0].mxu0 %v1204
        %v1272 = vpop.f32.mrb[0].mxu0
        %v1273 = vadd.f32 0.0, %v1272
        %v1274 = vpop.f32.mrb[0].mxu0
        %1275 = vdwg.mxu0
        %v1277 = vsel %vm789, %v1115, 0
        %1279 = vmatprep.subr.mxu0 0.0
        %1280 = vmatpush1.msra.mxu0 %v787
        %1281 = vmatprep.subr.mxu0 0.0
        %1282 = vmatpush1.msra.mxu0 0.0
        %1283 = vmatprep.subr.mxu0 0.0
        %1284 = vmatpush1.msra.mxu0 0.0
        %1285 = vmatprep.subr.mxu0 0.0
        %1286 = vmatpush1.msra.mxu0 0.0
        %1287 = vmatprep.subr.mxu0 0.0
        %1288 = vmatpush1.msra.mxu0 0.0
        %1289 = vmatprep.subr.mxu0 0.0
        %1290 = vmatpush1.msra.mxu0 0.0
        %1291 = vmatprep.subr.mxu0 0.0
        %1292 = vmatpush1.msra.mxu0 0.0
        %1293 = vmatprep.subr.mxu0 0.0
        %1294 = vmatpush1.msra.mxu0 0.0
        %1295 = vmatprep.subr.mxu0 0.0
        %1296 = vmatpush1.msra.mxu0 0.0
        %1297 = vmatprep.subr.mxu0 0.0
        %1298 = vmatpush1.msra.mxu0 0.0
        %1299 = vmatprep.subr.mxu0 0.0
        %1300 = vmatpush1.msra.mxu0 0.0
        %1301 = vmatprep.subr.mxu0 0.0
        %1302 = vmatpush1.msra.mxu0 0.0
        %1303 = vmatprep.subr.mxu0 0.0
        %1304 = vmatpush1.msra.mxu0 0.0
        %1305 = vmatprep.subr.mxu0 0.0
        %1306 = vmatpush1.msra.mxu0 0.0
        %1307 = vmatprep.subr.mxu0 0.0
        %1308 = vmatpush1.msra.mxu0 0.0
        %1309 = vmatprep.subr.mxu0 0.0
        %1310 = vmatpush1.msra.mxu0 0.0
        %1311 = vmatprep.subr.mxu0 0.0
        %1312 = vmatpush1.msra.mxu0 0.0
        %1313 = vmatprep.subr.mxu0 0.0
        %1314 = vmatpush1.msra.mxu0 0.0
        %1315 = vmatprep.subr.mxu0 0.0
        %1316 = vmatpush1.msra.mxu0 0.0
        %1317 = vmatprep.subr.mxu0 0.0
        %1318 = vmatpush1.msra.mxu0 0.0
        %1319 = vmatprep.subr.mxu0 0.0
        %1320 = vmatpush1.msra.mxu0 0.0
        %1321 = vmatprep.subr.mxu0 0.0
        %1322 = vmatpush1.msra.mxu0 0.0
        %1323 = vmatprep.subr.mxu0 0.0
        %1324 = vmatpush1.msra.mxu0 0.0
        %1325 = vmatprep.subr.mxu0 0.0
        %1326 = vmatpush1.msra.mxu0 0.0
        %1327 = vmatprep.subr.mxu0 0.0
        %1328 = vmatpush1.msra.mxu0 0.0
        %1329 = vmatprep.subr.mxu0 0.0
        %1330 = vmatpush1.msra.mxu0 0.0
        %1331 = vmatprep.subr.mxu0 0.0
        %1332 = vmatpush1.msra.mxu0 0.0
        %1333 = vmatprep.subr.mxu0 0.0
        %1334 = vmatpush1.msra.mxu0 0.0
        %1335 = vmatprep.subr.mxu0 0.0
        %1336 = vmatpush1.msra.mxu0 0.0
        %1337 = vmatprep.subr.mxu0 0.0
        %1338 = vmatpush1.msra.mxu0 0.0
        %1339 = vmatprep.subr.mxu0 0.0
        %1340 = vmatpush1.msra.mxu0 0.0
        %1341 = vmatprep.subr.mxu0 0.0
        %1342 = vmatpush1.msra.mxu0 0.0
        %1343 = vmatprep.mubr.f32.mxu0 0.0
        %1344 = vmatmul.mubr.f32.gmra.mrb[0].mxu0 %v1277
        %v1345 = vpop.f32.mrb[0].mxu0
        %v1346 = vadd.f32 0.0, %v1345
        %v1347 = vpop.f32.mrb[0].mxu0
        %1348 = vdwg.mxu0
        %v1350 = vsel %vm789, %v1117, 0
        %1352 = vmatprep.subr.mxu0 0.0
        %1353 = vmatpush1.msra.mxu0 %v788
        %1354 = vmatprep.subr.mxu0 0.0
        %1355 = vmatpush1.msra.mxu0 0.0
        %1356 = vmatprep.subr.mxu0 0.0
        %1357 = vmatpush1.msra.mxu0 0.0
        %1358 = vmatprep.subr.mxu0 0.0
        %1359 = vmatpush1.msra.mxu0 0.0
        %1360 = vmatprep.subr.mxu0 0.0
        %1361 = vmatpush1.msra.mxu0 0.0
        %1362 = vmatprep.subr.mxu0 0.0
        %1363 = vmatpush1.msra.mxu0 0.0
        %1364 = vmatprep.subr.mxu0 0.0
        %1365 = vmatpush1.msra.mxu0 0.0
        %1366 = vmatprep.subr.mxu0 0.0
        %1367 = vmatpush1.msra.mxu0 0.0
        %1368 = vmatprep.subr.mxu0 0.0
        %1369 = vmatpush1.msra.mxu0 0.0
        %1370 = vmatprep.subr.mxu0 0.0
        %1371 = vmatpush1.msra.mxu0 0.0
        %1372 = vmatprep.subr.mxu0 0.0
        %1373 = vmatpush1.msra.mxu0 0.0
        %1374 = vmatprep.subr.mxu0 0.0
        %1375 = vmatpush1.msra.mxu0 0.0
        %1376 = vmatprep.subr.mxu0 0.0
        %1377 = vmatpush1.msra.mxu0 0.0
        %1378 = vmatprep.subr.mxu0 0.0
        %1379 = vmatpush1.msra.mxu0 0.0
        %1380 = vmatprep.subr.mxu0 0.0
        %1381 = vmatpush1.msra.mxu0 0.0
        %1382 = vmatprep.subr.mxu0 0.0
        %1383 = vmatpush1.msra.mxu0 0.0
        %1384 = vmatprep.subr.mxu0 0.0
        %1385 = vmatpush1.msra.mxu0 0.0
        %1386 = vmatprep.subr.mxu0 0.0
        %1387 = vmatpush1.msra.mxu0 0.0
        %1388 = vmatprep.subr.mxu0 0.0
        %1389 = vmatpush1.msra.mxu0 0.0
        %1390 = vmatprep.subr.mxu0 0.0
        %1391 = vmatpush1.msra.mxu0 0.0
        %1392 = vmatprep.subr.mxu0 0.0
        %1393 = vmatpush1.msra.mxu0 0.0
        %1394 = vmatprep.subr.mxu0 0.0
        %1395 = vmatpush1.msra.mxu0 0.0
        %1396 = vmatprep.subr.mxu0 0.0
        %1397 = vmatpush1.msra.mxu0 0.0
        %1398 = vmatprep.subr.mxu0 0.0
        %1399 = vmatpush1.msra.mxu0 0.0
        %1400 = vmatprep.subr.mxu0 0.0
        %1401 = vmatpush1.msra.mxu0 0.0
        %1402 = vmatprep.subr.mxu0 0.0
        %1403 = vmatpush1.msra.mxu0 0.0
        %1404 = vmatprep.subr.mxu0 0.0
        %1405 = vmatpush1.msra.mxu0 0.0
        %1406 = vmatprep.subr.mxu0 0.0
        %1407 = vmatpush1.msra.mxu0 0.0
        %1408 = vmatprep.subr.mxu0 0.0
        %1409 = vmatpush1.msra.mxu0 0.0
        %1410 = vmatprep.subr.mxu0 0.0
        %1411 = vmatpush1.msra.mxu0 0.0
        %1412 = vmatprep.subr.mxu0 0.0
        %1413 = vmatpush1.msra.mxu0 0.0
        %1414 = vmatprep.subr.mxu0 0.0
        %1415 = vmatpush1.msra.mxu0 0.0
        %1416 = vmatprep.mubr.f32.mxu0 0.0
        %1417 = vmatmul.mubr.f32.gmra.mrb[0].mxu0 %v1350
        %v1418 = vpop.f32.mrb[0].mxu0
        %v1419 = vadd.f32 0.0, %v1418
        %v1420 = vpop.f32.mrb[0].mxu0
        %1421 = vdwg.mxu0
        %v1422 = vrcp.pop %v1120
        %v1423 = vrcp.pop %v1123
        %v1424 = vrcp.pop %v1126
        %v1425 = vrcp.pop %v1129
        %v1426 = vmul.f32 %v1200, %v1422
        %v1427 = vmul.f32 %v1273, %v1423
        %v1428 = vmul.f32 %v1346, %v1424
        %v1429 = vmul.f32 %v1419, %v1425
        %v1430 = vcombine.low %v1426, %v1428
        %v1431 = vcombine.high %v1426, %v1428
        %v1433 = vunpack.c.l.s4 1983009808
        %v1434 = vunpack.c.0.s8 %v1433
        %v1435 = vlaneseq
        %v1436 = vshrl.u32 %v1435, 7
        %v1437 = vsub.s32 %v1434, %v1436
        %v1438 = vrot.slane %v1430, %v1437
        %v1440 = vunpack.c.l.s4 1983009808
        %v1441 = vunpack.c.0.s8 %v1440
        %v1442 = vlaneseq
        %v1443 = vshrl.u32 %v1442, 7
        %v1444 = vsub.s32 %v1441, %v1443
        %v1445 = vrot.slane %v1431, %v1444
        %v1446 = vcombine.low %v1427, %v1429
        %v1447 = vcombine.high %v1427, %v1429
        %v1449 = vunpack.c.l.s4 1983009808
        %v1450 = vunpack.c.0.s8 %v1449
        %v1451 = vlaneseq
        %v1452 = vshrl.u32 %v1451, 7
        %v1453 = vsub.s32 %v1450, %v1452
        %v1454 = vrot.slane %v1446, %v1453
        %v1456 = vunpack.c.l.s4 1983009808
        %v1457 = vunpack.c.0.s8 %v1456
        %v1458 = vlaneseq
        %v1459 = vshrl.u32 %v1458, 7
        %v1460 = vsub.s32 %v1457, %v1459
        %v1461 = vrot.slane %v1447, %v1460
        %v1462 = vcombine.low %v1438, %v1454
        %v1463 = vcombine.high %v1438, %v1454
        %v1465 = vunpack.c.l.s4 1934713408
        %v1466 = vunpack.c.0.s8 %v1465
        %v1467 = vlaneseq
        %v1468 = vshrl.u32 %v1467, 7
        %v1469 = vsub.s32 %v1466, %v1468
        %v1470 = vrot.slane %v1462, %v1469
        %v1472 = vunpack.c.l.s4 1934713408
        %v1473 = vunpack.c.0.s8 %v1472
        %v1474 = vlaneseq
        %v1475 = vshrl.u32 %v1474, 7
        %v1476 = vsub.s32 %v1473, %v1475
        %v1477 = vrot.slane %v1463, %v1476
        %v1478 = vcombine.low %v1445, %v1461
        %v1479 = vcombine.high %v1445, %v1461
        %v1481 = vunpack.c.l.s4 1934713408
        %v1482 = vunpack.c.0.s8 %v1481
        %v1483 = vlaneseq
        %v1484 = vshrl.u32 %v1483, 7
        %v1485 = vsub.s32 %v1482, %v1484
        %v1486 = vrot.slane %v1478, %v1485
        %v1488 = vunpack.c.l.s4 1934713408
        %v1489 = vunpack.c.0.s8 %v1488
        %v1490 = vlaneseq
        %v1491 = vshrl.u32 %v1490, 7
        %v1492 = vsub.s32 %v1489, %v1491
        %v1493 = vrot.slane %v1479, %v1492
        %v1494 = vcombine.high %v1470, 0.0
        %v1495 = vcombine.high %v1477, 0.0
        %v1496 = vcombine.high %v1486, 0.0
        %v1497 = vcombine.high %v1493, 0.0
        %v1498 = vcombine.low %v1470, %v1477
        %v1500 = vunpack.c.l.s4 1983009808
        %v1501 = vunpack.c.0.s8 %v1500
        %v1502 = vlaneseq
        %v1503 = vshrl.u32 %v1502, 7
        %v1504 = vsub.s32 %v1501, %v1503
        %v1505 = vrot.slane %v1498, %v1504
        %v1506 = vcombine.low %v1494, %v1495
        %v1508 = vunpack.c.l.s4 1983009808
        %v1509 = vunpack.c.0.s8 %v1508
        %v1510 = vlaneseq
        %v1511 = vshrl.u32 %v1510, 7
        %v1512 = vsub.s32 %v1509, %v1511
        %v1513 = vrot.slane %v1506, %v1512
        %v1514 = vcombine.low %v1486, %v1493
        %v1516 = vunpack.c.l.s4 1983009808
        %v1517 = vunpack.c.0.s8 %v1516
        %v1518 = vlaneseq
        %v1519 = vshrl.u32 %v1518, 7
        %v1520 = vsub.s32 %v1517, %v1519
        %v1521 = vrot.slane %v1514, %v1520
        %v1522 = vcombine.low %v1496, %v1497
        %v1524 = vunpack.c.l.s4 1983009808
        %v1525 = vunpack.c.0.s8 %v1524
        %v1526 = vlaneseq
        %v1527 = vshrl.u32 %v1526, 7
        %v1528 = vsub.s32 %v1525, %v1527
        %v1529 = vrot.slane %v1522, %v1528
        %v1530 = vcombine.low %v1505, %v1513
        %v1531 = vcombine.high %v1505, %v1513
        %v1533 = vunpack.c.l.s4 1934713408
        %v1534 = vunpack.c.0.s8 %v1533
        %v1535 = vlaneseq
        %v1536 = vshrl.u32 %v1535, 7
        %v1537 = vsub.s32 %v1534, %v1536
        %v1538 = vrot.slane %v1530, %v1537
        %v1540 = vunpack.c.l.s4 1934713408
        %v1541 = vunpack.c.0.s8 %v1540
        %v1542 = vlaneseq
        %v1543 = vshrl.u32 %v1542, 7
        %v1544 = vsub.s32 %v1541, %v1543
        %v1545 = vrot.slane %v1531, %v1544
        %v1546 = vcombine.low %v1521, %v1529
        %v1547 = vcombine.high %v1521, %v1529
        %v1549 = vunpack.c.l.s4 1934713408
        %v1550 = vunpack.c.0.s8 %v1549
        %v1551 = vlaneseq
        %v1552 = vshrl.u32 %v1551, 7
        %v1553 = vsub.s32 %v1550, %v1552
        %v1554 = vrot.slane %v1546, %v1553
        %v1556 = vunpack.c.l.s4 1934713408
        %v1557 = vunpack.c.0.s8 %v1556
        %v1558 = vlaneseq
        %v1559 = vshrl.u32 %v1558, 7
        %v1560 = vsub.s32 %v1557, %v1559
        %v1561 = vrot.slane %v1547, %v1560
        %v1562 = vcombine.low %v1538, %v1554
        %v1563 = vcombine.high %v1538, %v1554
        %v1564 = vcombine.low %v1545, %v1561
        %v1565 = vcombine.high %v1545, %v1561
        %1567 = vrot.lane.b32.xlu0 %v1563, 8
        %v1568 = vpop.permute.xlu0 %1567
        %1571 = vrot.lane.b32.xlu0 %v1564, 16
        %v1572 = vpop.permute.xlu0 %1571
        %1575 = vrot.lane.b32.xlu0 %v1565, 24
        %v1576 = vpop.permute.xlu0 %1575
        %v1578 = vsel %vm789, %v1562, %v1568
        %vm1579 = vcmask 130048
        %v1580 = vsel %vm1579, %v1578, %v1572
        %vm1581 = vcmask 195584
        %v1582 = vsel %vm1581, %v1580, %v1576
        %v1583 = vld [vmem:[#allocation10] sm:$0xff]
        %v1584 = vld [vmem:[#allocation10 + $0x8] sm:$0xff]
        %v1585 = vld [vmem:[#allocation10 + $0x10] sm:$0xff]
        %v1586 = vld [vmem:[#allocation10 + $0x18] sm:$0xff]
        %vm1587 = vcmask 261120
        %v1589 = vsel %vm1587, %v1582, 0
        %1591 = vmatprep.subr.mxu0 0.0
        %1592 = vmatpush1.msra.mxu0 %v1583
        %1593 = vmatprep.subr.mxu0 0.0
        %1594 = vmatpush1.msra.mxu0 %v1584
        %1595 = vmatprep.subr.mxu0 0.0
        %1596 = vmatpush1.msra.mxu0 %v1585
        %1597 = vmatprep.subr.mxu0 0.0
        %1598 = vmatpush1.msra.mxu0 %v1586
        %1599 = vmatprep.subr.mxu0 0.0
        %1600 = vmatpush1.msra.mxu0 0.0
        %1601 = vmatprep.subr.mxu0 0.0
        %1602 = vmatpush1.msra.mxu0 0.0
        %1603 = vmatprep.subr.mxu0 0.0
        %1604 = vmatpush1.msra.mxu0 0.0
        %1605 = vmatprep.subr.mxu0 0.0
        %1606 = vmatpush1.msra.mxu0 0.0
        %1607 = vmatprep.subr.mxu0 0.0
        %1608 = vmatpush1.msra.mxu0 0.0
        %1609 = vmatprep.subr.mxu0 0.0
        %1610 = vmatpush1.msra.mxu0 0.0
        %1611 = vmatprep.subr.mxu0 0.0
        %1612 = vmatpush1.msra.mxu0 0.0
        %1613 = vmatprep.subr.mxu0 0.0
        %1614 = vmatpush1.msra.mxu0 0.0
        %1615 = vmatprep.subr.mxu0 0.0
        %1616 = vmatpush1.msra.mxu0 0.0
        %1617 = vmatprep.subr.mxu0 0.0
        %1618 = vmatpush1.msra.mxu0 0.0
        %1619 = vmatprep.subr.mxu0 0.0
        %1620 = vmatpush1.msra.mxu0 0.0
        %1621 = vmatprep.subr.mxu0 0.0
        %1622 = vmatpush1.msra.mxu0 0.0
        %1623 = vmatprep.subr.mxu0 0.0
        %1624 = vmatpush1.msra.mxu0 0.0
        %1625 = vmatprep.subr.mxu0 0.0
        %1626 = vmatpush1.msra.mxu0 0.0
        %1627 = vmatprep.subr.mxu0 0.0
        %1628 = vmatpush1.msra.mxu0 0.0
        %1629 = vmatprep.subr.mxu0 0.0
        %1630 = vmatpush1.msra.mxu0 0.0
        %1631 = vmatprep.subr.mxu0 0.0
        %1632 = vmatpush1.msra.mxu0 0.0
        %1633 = vmatprep.subr.mxu0 0.0
        %1634 = vmatpush1.msra.mxu0 0.0
        %1635 = vmatprep.subr.mxu0 0.0
        %1636 = vmatpush1.msra.mxu0 0.0
        %1637 = vmatprep.subr.mxu0 0.0
        %1638 = vmatpush1.msra.mxu0 0.0
        %1639 = vmatprep.subr.mxu0 0.0
        %1640 = vmatpush1.msra.mxu0 0.0
        %1641 = vmatprep.subr.mxu0 0.0
        %1642 = vmatpush1.msra.mxu0 0.0
        %1643 = vmatprep.subr.mxu0 0.0
        %1644 = vmatpush1.msra.mxu0 0.0
        %1645 = vmatprep.subr.mxu0 0.0
        %1646 = vmatpush1.msra.mxu0 0.0
        %1647 = vmatprep.subr.mxu0 0.0
        %1648 = vmatpush1.msra.mxu0 0.0
        %1649 = vmatprep.subr.mxu0 0.0
        %1650 = vmatpush1.msra.mxu0 0.0
        %1651 = vmatprep.subr.mxu0 0.0
        %1652 = vmatpush1.msra.mxu0 0.0
        %1653 = vmatprep.subr.mxu0 0.0
        %1654 = vmatpush1.msra.mxu0 0.0
        %1655 = vmatprep.mubr.f32.mxu0 0.0
        %1656 = vmatmul.mubr.f32.gmra.mrb[0].mxu0 %v1589
        %v1657 = vpop.f32.mrb[0].mxu0
        %v1658 = vadd.f32 0.0, %v1657
        %v1659 = vpop.f32.mrb[0].mxu0
        %1660 = vdwg.mxu0
        %1661 = vst.msk [vmem:[%s228] sm:$0xff] %vm1587, %v1658
        %s1662 = sand.u32 %s111, 1
        %s1663 = scalar_lea.sflag [#allocation7], %s1662
        %s1664 = sand.u32 %s111, 1
        %s1665 = smul.addr %s1664, 8
        %s1666 = scalar_lea.vmem [#allocation11], %s1665
        // Predicated region
        $region49: #{tpu_custom_call.1} parent=31 // pred_check
          %p1667 = pneg %p121
        $region50: #{tpu_custom_call.1} parent=31 // pred_check_branch
          %1669 = sbr.rel (%p1667) target = $region52
        $region51: #{tpu_custom_call.1} parent=31 // pred_region
          %s1671 = ssub.s32 128, 128
          %1672 = vsyncadd %s1663, %s1671
          %s1673 = sadd.s32 %s26, %s25
          %s1674 = smul.addr %s1673, 128
          %s1675 = scalar_lea.hbm %s3, %s1674
          %s1677 = sshll.u32 %s1666, 4
          %s1678 = int_to_ptr.vmem [resolvable:$true] %s1677
          %1680 = dma.vmem_to_hbm [thread:$0]  %s1678, 128, %s1675, %s1663
        $region52: #{tpu_custom_call.1} parent=31 // pred_fallthru
          _
      $region32: #{tpu_custom_call.1} parent=5 // pred_fallthru
        _
      %p1681 = scmp.le.s32.totalorder 2, %s16
      // Predicated region
      $region53: #{tpu_custom_call.1} parent=5 // pred_check
        %p1682 = pneg %p1681
      $region54: #{tpu_custom_call.1} parent=5 // pred_check_branch
        %1684 = sbr.rel (%p1682) target = $region56
      $region55: #{tpu_custom_call.1} parent=5 // pred_region
        %s1685 = ssub.s32 %s16, 2
        // Predicated region
        $region57: #{tpu_custom_call.1} parent=55 // pred_check
          %p1686 = pneg %p127
        $region58: #{tpu_custom_call.1} parent=55 // pred_check_branch
          %1688 = sbr.rel (%p1686) target = $region60
        $region59: #{tpu_custom_call.1} parent=55 // pred_region
          %s1689 = sand.u32 %s112, 1
          %s1690 = scalar_lea.sflag [#allocation7], %s1689
          %s1691 = sand.u32 %s112, 1
          %s1692 = smul.addr %s1691, 8
          %s1693 = scalar_lea.vmem [#allocation11], %s1692
          %1694 = dma.done %s1690, 128
        $region60: #{tpu_custom_call.1} parent=55 // pred_fallthru
          _
      $region56: #{tpu_custom_call.1} parent=5 // pred_fallthru
        _
    $region6: #{tpu_custom_call.1} parent=1 // loop_footer
      %s20 = sadd.s32 1, %s16
    $region7: #{tpu_custom_call.1} parent=1 // loop_footer_branch
      %15 = sbr.rel target = $region3
    $region8: #{tpu_custom_call.1} parent=1 // loop_exit
      _
    %1695 = vsyncpa [#allocation6], 1
    %s1696 = scalar_lea.sflag [#allocation6], 1
    %1697 = vsyncpa %s1696, 1
    %1698 = vsyncpa [#allocation9], 1
    %1699 = vsyncpa [#allocation7], 1
    %s1700 = scalar_lea.sflag [#allocation7], 1
    %1701 = vsyncpa %s1700, 1

</llo_original>
